<compile_context>
chip_gen: v6e
topology: v6e:2x2x1
jax: 0.10.0
libtpu: 0.0.40
codegen_flags: <defaults>
</compile_context>

<pallas_src>
import functools

import numpy as np
import jax
import jax.numpy as jnp
from jax.experimental import pallas as pl
from jax.experimental.pallas import tpu as pltpu


def _bilinear_axis_matrix(in_size, out_size, scale):
    """[out_size, in_size] 1-D interpolation matrix matching PyTorch
    upsample_bilinear2d with align_corners=False and an explicit scale_factor."""
    A = np.zeros((out_size, in_size), np.float32)
    rscale = 1.0 / float(scale)
    for o in range(out_size):
        src = rscale * (o + 0.5) - 0.5
        src = max(src, 0.0)
        i0 = min(int(np.floor(src)), in_size - 1)
        i1 = min(i0 + 1, in_size - 1)
        l1 = float(src - i0)
        A[o, i0] += 1.0 - l1
        A[o, i1] += l1
    return A


def _downsample_kernel(xb_ref, xr_ref, ah_ref, awt_ref, wb_ref, wr_ref,
                       ob_ref, or_ref):
    # xb_ref / xr_ref : [1, C_in*H, W]          f32  (cast to bf16 in VMEM)
    # ah_ref          : [Ho, H]                 bf16 (height interpolation)
    # awt_ref         : [W, Wo]                 bf16 (width interpolation, transposed)
    # wb_ref / wr_ref : [C_out, C_in]           f32, SMEM (1x1 conv weights, no bias)
    # ob_ref / or_ref : [1, C_out, Ho, Wo]      f32
    ah = ah_ref[...]
    awt = awt_ref[...]
    Ho, H = ah.shape
    C_out, C_in = wb_ref.shape

    # --- width resize: stack BOTH streams onto the sublane (M) axis and do one
    #     MXU matmul over the shared contraction dim W.  [2*C_in*H, W] @ [W, Wo]
    x_all = jnp.concatenate(
        [xb_ref[0].astype(jnp.bfloat16), xr_ref[0].astype(jnp.bfloat16)], axis=0)
    t1 = jnp.dot(x_all, awt, preferred_element_type=jnp.float32)   # [2*C_in*H, Wo]

    def _finish_stream(base_row, w_ref, o_ref):
        # --- height resize, per channel: Ah [Ho,H] @ t1_c [H,Wo] -> [Ho,Wo]
        t2 = []
        for c in range(C_in):
            lo = base_row + c * H
            blk = t1[lo:lo + H, :].astype(jnp.bfloat16)             # [H, Wo]
            t2.append(jnp.dot(ah, blk, preferred_element_type=jnp.float32))
        # --- 1x1 conv as scalar-broadcast VPU MACs (weights read from SMEM);
        #     a C_out x C_in x (Ho*Wo) matmul would waste the MXU at this size.
        for o in range(C_out):
            acc = w_ref[o, 0] * t2[0]
            for c in range(1, C_in):
                acc = acc + w_ref[o, c] * t2[c]
            o_ref[0, o] = acc                                        # [Ho, Wo]

    _finish_stream(0, wb_ref, ob_ref)
    _finish_stream(C_in * H, wr_ref, or_ref)


@functools.partial(jax.jit, static_argnames=("s_factor",))
def downsample_forward(x_B, x_R, w_B, w_R, s_factor):
    """x_B, x_R: [B, C_in, H, W] f32 (NCHW); w_B, w_R: [C_out, C_in] (1x1 conv,
    bias=False).  Returns [out_B, out_R], each [B, C_out, H_out, W_out] f32."""
    B, C_in, H, W = x_B.shape
    C_out = w_B.shape[0]
    H_out = int(np.floor(H * s_factor))
    W_out = int(np.floor(W * s_factor))

    # Tiny separable interpolation matrices (compile-time constants).
    # Bilinear taps for common scales (0.25/0.5/0.75/1.0) are exact in bf16.
    ah = jnp.asarray(_bilinear_axis_matrix(H, H_out, s_factor), jnp.bfloat16)      # [Ho, H]
    awt = jnp.asarray(_bilinear_axis_matrix(W, W_out, s_factor).T, jnp.bfloat16)   # [W, Wo]

    # Free metadata reshape only — inputs stay f32, cast happens inside the kernel.
    xb = x_B.reshape(B, C_in * H, W)
    xr = x_R.reshape(B, C_in * H, W)

    # Advisory cost / VMEM sizing.
    per_stream_flops = (2 * C_in * H * W * W_out            # width resize
                        + 2 * C_in * H_out * H * W_out      # height resize
                        + 2 * C_out * C_in * H_out * W_out)  # 1x1 conv
    flops = int(2 * B * per_stream_flops)
    const_bytes = (H_out * H + W * W_out) * 2 + 2 * C_out * C_in * 4
    bytes_accessed = int(2 * B * C_in * H * W * 4
                         + 2 * B * C_out * H_out * W_out * 4
                         + const_bytes)
    blk_in_bytes = 2 * (C_in * H * W) * 4                    # both streams, f32 block
    blk_out_bytes = 2 * (C_out * H_out * W_out) * 4
    vmem_need = 2 * (blk_in_bytes + blk_out_bytes) + 2 * const_bytes   # double-buffered
    vmem_limit = int(min(max(4 * vmem_need, 8 << 20), 64 << 20))       # v7x-safe cap

    out_B, out_R = pl.pallas_call(
        _downsample_kernel,
        out_shape=(jax.ShapeDtypeStruct((B, C_out, H_out, W_out), jnp.float32),
                   jax.ShapeDtypeStruct((B, C_out, H_out, W_out), jnp.float32)),
        grid=(B,),
        in_specs=[
            pl.BlockSpec((1, C_in * H, W), lambda b: (b, 0, 0)),
            pl.BlockSpec((1, C_in * H, W), lambda b: (b, 0, 0)),
            pl.BlockSpec((H_out, H), lambda b: (0, 0)),
            pl.BlockSpec((W, W_out), lambda b: (0, 0)),
            pl.BlockSpec(memory_space=pltpu.MemorySpace.SMEM),
            pl.BlockSpec(memory_space=pltpu.MemorySpace.SMEM),
        ],
        out_specs=(
            pl.BlockSpec((1, C_out, H_out, W_out), lambda b: (b, 0, 0, 0)),
            pl.BlockSpec((1, C_out, H_out, W_out), lambda b: (b, 0, 0, 0)),
        ),
        compiler_params=pltpu.CompilerParams(
            dimension_semantics=("parallel",),
            vmem_limit_bytes=vmem_limit),
        cost_estimate=pl.CostEstimate(flops=flops, transcendentals=0,
                                      bytes_accessed=bytes_accessed),
    )(xb, xr, ah, awt, w_B, w_R)

    return [out_B, out_R]


def _reference(x, w, H_out, W_out, s_factor):
    """Pure-JAX f32 reference (separable bilinear, then 1x1 conv)."""
    B, C, H, W = x.shape
    ah = jnp.asarray(_bilinear_axis_matrix(H, H_out, s_factor), jnp.float32)
    aw = jnp.asarray(_bilinear_axis_matrix(W, W_out, s_factor), jnp.float32)
    r = jnp.einsum('oh,bchw,pw->bcop', ah, x, aw)        # [B, C, Ho, Wo]
    return jnp.einsum('kc,bcop->bkop', w, r)             # [B, C_out, Ho, Wo]


if __name__ == "__main__":
    B, C_in, H, W = 2, 4, 16, 16
    C_out = 8
    s_factor = 0.5
    H_out, W_out = int(np.floor(H * s_factor)), int(np.floor(W * s_factor))

    key = jax.random.PRNGKey(0)
    kxb, kxr, kwb, kwr = jax.random.split(key, 4)
    x_B = jax.random.normal(kxb, (B, C_in, H, W), jnp.float32)
    x_R = jax.random.normal(kxr, (B, C_in, H, W), jnp.float32)
    # Conv2d(C_in, C_out, 1, bias=False) weights squeezed to [C_out, C_in].
    w_B = jax.random.normal(kwb, (C_out, C_in), jnp.float32) / np.sqrt(C_in)
    w_R = jax.random.normal(kwr, (C_out, C_in), jnp.float32) / np.sqrt(C_in)

    out_B, out_R = downsample_forward(x_B, x_R, w_B, w_R, s_factor)
    out_B, out_R = jax.block_until_ready((out_B, out_R))

    assert out_B.shape == (B, C_out, H_out, W_out)
    assert out_R.shape == (B, C_out, H_out, W_out)
    assert bool(jnp.all(jnp.isfinite(out_B))) and bool(jnp.all(jnp.isfinite(out_R)))

    ref_B = _reference(x_B, w_B, H_out, W_out, s_factor)
    ref_R = _reference(x_R, w_R, H_out, W_out, s_factor)
    assert bool(jnp.allclose(out_B, ref_B, rtol=5e-2, atol=5e-2)), "B-stream mismatch"
    assert bool(jnp.allclose(out_R, ref_R, rtol=5e-2, atol=5e-2)), "R-stream mismatch"

    print("KERNEL_OK")
</pallas_src>

<mosaic_0001>
module attributes {stable_mosaic.version = 11 : i64} {
  func.func @_downsample_kernel(%arg0: i32, %arg1: memref<1x64x16xf32, #tpu.memory_space<vmem>>, %arg2: memref<1x64x16xf32, #tpu.memory_space<vmem>>, %arg3: memref<8x16xbf16, #tpu.memory_space<vmem>>, %arg4: memref<16x8xbf16, #tpu.memory_space<vmem>>, %arg5: memref<8x4xf32, #tpu.memory_space<smem>>, %arg6: memref<8x4xf32, #tpu.memory_space<smem>>, %arg7: memref<1x8x8x8xf32, #tpu.memory_space<vmem>>, %arg8: memref<1x8x8x8xf32, #tpu.memory_space<vmem>>) attributes {dimension_semantics = [#tpu.dimension_semantics<parallel>], iteration_bounds = array<i64: 2>, scalar_prefetch = 0 : i64, scratch_operands = 0 : i64, tpu.core_type = #tpu.core_type<tc>, window_params = [{transform_indices = @transform_0, window_bounds = array<i64: 1, 64, 16>}, {transform_indices = @transform_1, window_bounds = array<i64: 1, 64, 16>}, {pipeline_mode = #tpu.pipeline_mode<synchronous>, transform_indices = @transform_2, window_bounds = array<i64: 8, 16>}, {pipeline_mode = #tpu.pipeline_mode<synchronous>, transform_indices = @transform_3, window_bounds = array<i64: 16, 8>}, {transform_indices = @transform_4, window_bounds = array<i64: 8, 4>}, {transform_indices = @transform_5, window_bounds = array<i64: 8, 4>}, {transform_indices = @transform_6, window_bounds = array<i64: 1, 8, 8, 8>}, {transform_indices = @transform_7, window_bounds = array<i64: 1, 8, 8, 8>}]} {
    %c0 = arith.constant 0 : index
    %c0_0 = arith.constant 0 : index
    %0 = vector.load %arg3[%c0, %c0_0] : memref<8x16xbf16, #tpu.memory_space<vmem>>, vector<8x16xbf16>
    %c0_1 = arith.constant 0 : index
    %c0_2 = arith.constant 0 : index
    %1 = vector.load %arg4[%c0_1, %c0_2] : memref<16x8xbf16, #tpu.memory_space<vmem>>, vector<16x8xbf16>
    %c0_3 = arith.constant 0 : index
    %c0_4 = arith.constant 0 : index
    %c0_5 = arith.constant 0 : index
    %2 = vector.load %arg1[%c0_3, %c0_4, %c0_5] : memref<1x64x16xf32, #tpu.memory_space<vmem>>, vector<1x64x16xf32>
    %3 = vector.shape_cast %2 : vector<1x64x16xf32> to vector<64x16xf32>
    %4 = arith.truncf %3 : vector<64x16xf32> to vector<64x16xbf16>
    %c0_6 = arith.constant 0 : index
    %c0_7 = arith.constant 0 : index
    %c0_8 = arith.constant 0 : index
    %5 = vector.load %arg2[%c0_6, %c0_7, %c0_8] : memref<1x64x16xf32, #tpu.memory_space<vmem>>, vector<1x64x16xf32>
    %6 = vector.shape_cast %5 : vector<1x64x16xf32> to vector<64x16xf32>
    %7 = arith.truncf %6 : vector<64x16xf32> to vector<64x16xbf16>
    %8 = tpu.concatenate %4, %7 in 0 : vector<64x16xbf16>, vector<64x16xbf16> -> vector<128x16xbf16>
    %cst = arith.constant dense<0.000000e+00> : vector<128x8xf32>
    %9 = tpu.matmul %8, %1, %cst {dimension_numbers = #tpu.dot_dimension_numbers<[1], [0], [0], [1], [0, 0, 1, 1], [], []>} : vector<128x16xbf16>, vector<16x8xbf16>, vector<128x8xf32> -> vector<128x8xf32>
    %10 = vector.extract_strided_slice %9 {offsets = [0, 0], sizes = [16, 8], strides = [1, 1]} : vector<128x8xf32> to vector<16x8xf32>
    %11 = arith.truncf %10 : vector<16x8xf32> to vector<16x8xbf16>
    %cst_9 = arith.constant dense<0.000000e+00> : vector<8x8xf32>
    %12 = tpu.matmul %0, %11, %cst_9 {dimension_numbers = #tpu.dot_dimension_numbers<[1], [0], [0], [1], [0, 0, 1, 1], [], []>} : vector<8x16xbf16>, vector<16x8xbf16>, vector<8x8xf32> -> vector<8x8xf32>
    %13 = vector.extract_strided_slice %9 {offsets = [16, 0], sizes = [16, 8], strides = [1, 1]} : vector<128x8xf32> to vector<16x8xf32>
    %14 = arith.truncf %13 : vector<16x8xf32> to vector<16x8xbf16>
    %cst_10 = arith.constant dense<0.000000e+00> : vector<8x8xf32>
    %15 = tpu.matmul %0, %14, %cst_10 {dimension_numbers = #tpu.dot_dimension_numbers<[1], [0], [0], [1], [0, 0, 1, 1], [], []>} : vector<8x16xbf16>, vector<16x8xbf16>, vector<8x8xf32> -> vector<8x8xf32>
    %16 = vector.extract_strided_slice %9 {offsets = [32, 0], sizes = [16, 8], strides = [1, 1]} : vector<128x8xf32> to vector<16x8xf32>
    %17 = arith.truncf %16 : vector<16x8xf32> to vector<16x8xbf16>
    %cst_11 = arith.constant dense<0.000000e+00> : vector<8x8xf32>
    %18 = tpu.matmul %0, %17, %cst_11 {dimension_numbers = #tpu.dot_dimension_numbers<[1], [0], [0], [1], [0, 0, 1, 1], [], []>} : vector<8x16xbf16>, vector<16x8xbf16>, vector<8x8xf32> -> vector<8x8xf32>
    %19 = vector.extract_strided_slice %9 {offsets = [48, 0], sizes = [16, 8], strides = [1, 1]} : vector<128x8xf32> to vector<16x8xf32>
    %20 = arith.truncf %19 : vector<16x8xf32> to vector<16x8xbf16>
    %cst_12 = arith.constant dense<0.000000e+00> : vector<8x8xf32>
    %21 = tpu.matmul %0, %20, %cst_12 {dimension_numbers = #tpu.dot_dimension_numbers<[1], [0], [0], [1], [0, 0, 1, 1], [], []>} : vector<8x16xbf16>, vector<16x8xbf16>, vector<8x8xf32> -> vector<8x8xf32>
    %c0_13 = arith.constant 0 : index
    %c0_14 = arith.constant 0 : index
    %22 = memref.load %arg5[%c0_13, %c0_14] : memref<8x4xf32, #tpu.memory_space<smem>>
    %23 = vector.broadcast %22 : f32 to vector<8x8xf32>
    %24 = arith.mulf %23, %12 : vector<8x8xf32>
    %c0_15 = arith.constant 0 : index
    %c1 = arith.constant 1 : index
    %25 = memref.load %arg5[%c0_15, %c1] : memref<8x4xf32, #tpu.memory_space<smem>>
    %26 = vector.broadcast %25 : f32 to vector<8x8xf32>
    %27 = arith.mulf %26, %15 : vector<8x8xf32>
    %28 = arith.addf %24, %27 : vector<8x8xf32>
    %c0_16 = arith.constant 0 : index
    %c2 = arith.constant 2 : index
    %29 = memref.load %arg5[%c0_16, %c2] : memref<8x4xf32, #tpu.memory_space<smem>>
    %30 = vector.broadcast %29 : f32 to vector<8x8xf32>
    %31 = arith.mulf %30, %18 : vector<8x8xf32>
    %32 = arith.addf %28, %31 : vector<8x8xf32>
    %c0_17 = arith.constant 0 : index
    %c3 = arith.constant 3 : index
    %33 = memref.load %arg5[%c0_17, %c3] : memref<8x4xf32, #tpu.memory_space<smem>>
    %34 = vector.broadcast %33 : f32 to vector<8x8xf32>
    %35 = arith.mulf %34, %21 : vector<8x8xf32>
    %36 = arith.addf %32, %35 : vector<8x8xf32>
    %c0_18 = arith.constant 0 : index
    %c0_19 = arith.constant 0 : index
    %c0_20 = arith.constant 0 : index
    %c0_21 = arith.constant 0 : index
    %37 = vector.load %arg7[%c0_18, %c0_19, %c0_20, %c0_21] : memref<1x8x8x8xf32, #tpu.memory_space<vmem>>, vector<1x1x8x8xf32>
    %38 = vector.shape_cast %37 : vector<1x1x8x8xf32> to vector<8x8xf32>
    %39 = vector.shape_cast %36 : vector<8x8xf32> to vector<1x1x8x8xf32>
    tpu.vector_store %arg7[%c0_18, %c0_19, %c0_20, %c0_21], %39 {strides = array<i32>} : memref<1x8x8x8xf32, #tpu.memory_space<vmem>>, vector<1x1x8x8xf32>,
    %c1_22 = arith.constant 1 : index
    %c0_23 = arith.constant 0 : index
    %40 = memref.load %arg5[%c1_22, %c0_23] : memref<8x4xf32, #tpu.memory_space<smem>>
    %41 = vector.broadcast %40 : f32 to vector<8x8xf32>
    %42 = arith.mulf %41, %12 : vector<8x8xf32>
    %c1_24 = arith.constant 1 : index
    %c1_25 = arith.constant 1 : index
    %43 = memref.load %arg5[%c1_24, %c1_25] : memref<8x4xf32, #tpu.memory_space<smem>>
    %44 = vector.broadcast %43 : f32 to vector<8x8xf32>
    %45 = arith.mulf %44, %15 : vector<8x8xf32>
    %46 = arith.addf %42, %45 : vector<8x8xf32>
    %c1_26 = arith.constant 1 : index
    %c2_27 = arith.constant 2 : index
    %47 = memref.load %arg5[%c1_26, %c2_27] : memref<8x4xf32, #tpu.memory_space<smem>>
    %48 = vector.broadcast %47 : f32 to vector<8x8xf32>
    %49 = arith.mulf %48, %18 : vector<8x8xf32>
    %50 = arith.addf %46, %49 : vector<8x8xf32>
    %c1_28 = arith.constant 1 : index
    %c3_29 = arith.constant 3 : index
    %51 = memref.load %arg5[%c1_28, %c3_29] : memref<8x4xf32, #tpu.memory_space<smem>>
    %52 = vector.broadcast %51 : f32 to vector<8x8xf32>
    %53 = arith.mulf %52, %21 : vector<8x8xf32>
    %54 = arith.addf %50, %53 : vector<8x8xf32>
    %c0_30 = arith.constant 0 : index
    %c1_31 = arith.constant 1 : index
    %c0_32 = arith.constant 0 : index
    %c0_33 = arith.constant 0 : index
    %55 = vector.load %arg7[%c0_30, %c1_31, %c0_32, %c0_33] : memref<1x8x8x8xf32, #tpu.memory_space<vmem>>, vector<1x1x8x8xf32>
    %56 = vector.shape_cast %55 : vector<1x1x8x8xf32> to vector<8x8xf32>
    %57 = vector.shape_cast %54 : vector<8x8xf32> to vector<1x1x8x8xf32>
    tpu.vector_store %arg7[%c0_30, %c1_31, %c0_32, %c0_33], %57 {strides = array<i32>} : memref<1x8x8x8xf32, #tpu.memory_space<vmem>>, vector<1x1x8x8xf32>,
    %c2_34 = arith.constant 2 : index
    %c0_35 = arith.constant 0 : index
    %58 = memref.load %arg5[%c2_34, %c0_35] : memref<8x4xf32, #tpu.memory_space<smem>>
    %59 = vector.broadcast %58 : f32 to vector<8x8xf32>
    %60 = arith.mulf %59, %12 : vector<8x8xf32>
    %c2_36 = arith.constant 2 : index
    %c1_37 = arith.constant 1 : index
    %61 = memref.load %arg5[%c2_36, %c1_37] : memref<8x4xf32, #tpu.memory_space<smem>>
    %62 = vector.broadcast %61 : f32 to vector<8x8xf32>
    %63 = arith.mulf %62, %15 : vector<8x8xf32>
    %64 = arith.addf %60, %63 : vector<8x8xf32>
    %c2_38 = arith.constant 2 : index
    %c2_39 = arith.constant 2 : index
    %65 = memref.load %arg5[%c2_38, %c2_39] : memref<8x4xf32, #tpu.memory_space<smem>>
    %66 = vector.broadcast %65 : f32 to vector<8x8xf32>
    %67 = arith.mulf %66, %18 : vector<8x8xf32>
    %68 = arith.addf %64, %67 : vector<8x8xf32>
    %c2_40 = arith.constant 2 : index
    %c3_41 = arith.constant 3 : index
    %69 = memref.load %arg5[%c2_40, %c3_41] : memref<8x4xf32, #tpu.memory_space<smem>>
    %70 = vector.broadcast %69 : f32 to vector<8x8xf32>
    %71 = arith.mulf %70, %21 : vector<8x8xf32>
    %72 = arith.addf %68, %71 : vector<8x8xf32>
    %c0_42 = arith.constant 0 : index
    %c2_43 = arith.constant 2 : index
    %c0_44 = arith.constant 0 : index
    %c0_45 = arith.constant 0 : index
    %73 = vector.load %arg7[%c0_42, %c2_43, %c0_44, %c0_45] : memref<1x8x8x8xf32, #tpu.memory_space<vmem>>, vector<1x1x8x8xf32>
    %74 = vector.shape_cast %73 : vector<1x1x8x8xf32> to vector<8x8xf32>
    %75 = vector.shape_cast %72 : vector<8x8xf32> to vector<1x1x8x8xf32>
    tpu.vector_store %arg7[%c0_42, %c2_43, %c0_44, %c0_45], %75 {strides = array<i32>} : memref<1x8x8x8xf32, #tpu.memory_space<vmem>>, vector<1x1x8x8xf32>,
    %c3_46 = arith.constant 3 : index
    %c0_47 = arith.constant 0 : index
    %76 = memref.load %arg5[%c3_46, %c0_47] : memref<8x4xf32, #tpu.memory_space<smem>>
    %77 = vector.broadcast %76 : f32 to vector<8x8xf32>
    %78 = arith.mulf %77, %12 : vector<8x8xf32>
    %c3_48 = arith.constant 3 : index
    %c1_49 = arith.constant 1 : index
    %79 = memref.load %arg5[%c3_48, %c1_49] : memref<8x4xf32, #tpu.memory_space<smem>>
    %80 = vector.broadcast %79 : f32 to vector<8x8xf32>
    %81 = arith.mulf %80, %15 : vector<8x8xf32>
    %82 = arith.addf %78, %81 : vector<8x8xf32>
    %c3_50 = arith.constant 3 : index
    %c2_51 = arith.constant 2 : index
    %83 = memref.load %arg5[%c3_50, %c2_51] : memref<8x4xf32, #tpu.memory_space<smem>>
    %84 = vector.broadcast %83 : f32 to vector<8x8xf32>
    %85 = arith.mulf %84, %18 : vector<8x8xf32>
    %86 = arith.addf %82, %85 : vector<8x8xf32>
    %c3_52 = arith.constant 3 : index
    %c3_53 = arith.constant 3 : index
    %87 = memref.load %arg5[%c3_52, %c3_53] : memref<8x4xf32, #tpu.memory_space<smem>>
    %88 = vector.broadcast %87 : f32 to vector<8x8xf32>
    %89 = arith.mulf %88, %21 : vector<8x8xf32>
    %90 = arith.addf %86, %89 : vector<8x8xf32>
    %c0_54 = arith.constant 0 : index
    %c3_55 = arith.constant 3 : index
    %c0_56 = arith.constant 0 : index
    %c0_57 = arith.constant 0 : index
    %91 = vector.load %arg7[%c0_54, %c3_55, %c0_56, %c0_57] : memref<1x8x8x8xf32, #tpu.memory_space<vmem>>, vector<1x1x8x8xf32>
    %92 = vector.shape_cast %91 : vector<1x1x8x8xf32> to vector<8x8xf32>
    %93 = vector.shape_cast %90 : vector<8x8xf32> to vector<1x1x8x8xf32>
    tpu.vector_store %arg7[%c0_54, %c3_55, %c0_56, %c0_57], %93 {strides = array<i32>} : memref<1x8x8x8xf32, #tpu.memory_space<vmem>>, vector<1x1x8x8xf32>,
    %c4 = arith.constant 4 : index
    %c0_58 = arith.constant 0 : index
    %94 = memref.load %arg5[%c4, %c0_58] : memref<8x4xf32, #tpu.memory_space<smem>>
    %95 = vector.broadcast %94 : f32 to vector<8x8xf32>
    %96 = arith.mulf %95, %12 : vector<8x8xf32>
    %c4_59 = arith.constant 4 : index
    %c1_60 = arith.constant 1 : index
    %97 = memref.load %arg5[%c4_59, %c1_60] : memref<8x4xf32, #tpu.memory_space<smem>>
    %98 = vector.broadcast %97 : f32 to vector<8x8xf32>
    %99 = arith.mulf %98, %15 : vector<8x8xf32>
    %100 = arith.addf %96, %99 : vector<8x8xf32>
    %c4_61 = arith.constant 4 : index
    %c2_62 = arith.constant 2 : index
    %101 = memref.load %arg5[%c4_61, %c2_62] : memref<8x4xf32, #tpu.memory_space<smem>>
    %102 = vector.broadcast %101 : f32 to vector<8x8xf32>
    %103 = arith.mulf %102, %18 : vector<8x8xf32>
    %104 = arith.addf %100, %103 : vector<8x8xf32>
    %c4_63 = arith.constant 4 : index
    %c3_64 = arith.constant 3 : index
    %105 = memref.load %arg5[%c4_63, %c3_64] : memref<8x4xf32, #tpu.memory_space<smem>>
    %106 = vector.broadcast %105 : f32 to vector<8x8xf32>
    %107 = arith.mulf %106, %21 : vector<8x8xf32>
    %108 = arith.addf %104, %107 : vector<8x8xf32>
    %c0_65 = arith.constant 0 : index
    %c4_66 = arith.constant 4 : index
    %c0_67 = arith.constant 0 : index
    %c0_68 = arith.constant 0 : index
    %109 = vector.load %arg7[%c0_65, %c4_66, %c0_67, %c0_68] : memref<1x8x8x8xf32, #tpu.memory_space<vmem>>, vector<1x1x8x8xf32>
    %110 = vector.shape_cast %109 : vector<1x1x8x8xf32> to vector<8x8xf32>
    %111 = vector.shape_cast %108 : vector<8x8xf32> to vector<1x1x8x8xf32>
    tpu.vector_store %arg7[%c0_65, %c4_66, %c0_67, %c0_68], %111 {strides = array<i32>} : memref<1x8x8x8xf32, #tpu.memory_space<vmem>>, vector<1x1x8x8xf32>,
    %c5 = arith.constant 5 : index
    %c0_69 = arith.constant 0 : index
    %112 = memref.load %arg5[%c5, %c0_69] : memref<8x4xf32, #tpu.memory_space<smem>>
    %113 = vector.broadcast %112 : f32 to vector<8x8xf32>
    %114 = arith.mulf %113, %12 : vector<8x8xf32>
    %c5_70 = arith.constant 5 : index
    %c1_71 = arith.constant 1 : index
    %115 = memref.load %arg5[%c5_70, %c1_71] : memref<8x4xf32, #tpu.memory_space<smem>>
    %116 = vector.broadcast %115 : f32 to vector<8x8xf32>
    %117 = arith.mulf %116, %15 : vector<8x8xf32>
    %118 = arith.addf %114, %117 : vector<8x8xf32>
    %c5_72 = arith.constant 5 : index
    %c2_73 = arith.constant 2 : index
    %119 = memref.load %arg5[%c5_72, %c2_73] : memref<8x4xf32, #tpu.memory_space<smem>>
    %120 = vector.broadcast %119 : f32 to vector<8x8xf32>
    %121 = arith.mulf %120, %18 : vector<8x8xf32>
    %122 = arith.addf %118, %121 : vector<8x8xf32>
    %c5_74 = arith.constant 5 : index
    %c3_75 = arith.constant 3 : index
    %123 = memref.load %arg5[%c5_74, %c3_75] : memref<8x4xf32, #tpu.memory_space<smem>>
    %124 = vector.broadcast %123 : f32 to vector<8x8xf32>
    %125 = arith.mulf %124, %21 : vector<8x8xf32>
    %126 = arith.addf %122, %125 : vector<8x8xf32>
    %c0_76 = arith.constant 0 : index
    %c5_77 = arith.constant 5 : index
    %c0_78 = arith.constant 0 : index
    %c0_79 = arith.constant 0 : index
    %127 = vector.load %arg7[%c0_76, %c5_77, %c0_78, %c0_79] : memref<1x8x8x8xf32, #tpu.memory_space<vmem>>, vector<1x1x8x8xf32>
    %128 = vector.shape_cast %127 : vector<1x1x8x8xf32> to vector<8x8xf32>
    %129 = vector.shape_cast %126 : vector<8x8xf32> to vector<1x1x8x8xf32>
    tpu.vector_store %arg7[%c0_76, %c5_77, %c0_78, %c0_79], %129 {strides = array<i32>} : memref<1x8x8x8xf32, #tpu.memory_space<vmem>>, vector<1x1x8x8xf32>,
    %c6 = arith.constant 6 : index
    %c0_80 = arith.constant 0 : index
    %130 = memref.load %arg5[%c6, %c0_80] : memref<8x4xf32, #tpu.memory_space<smem>>
    %131 = vector.broadcast %130 : f32 to vector<8x8xf32>
    %132 = arith.mulf %131, %12 : vector<8x8xf32>
    %c6_81 = arith.constant 6 : index
    %c1_82 = arith.constant 1 : index
    %133 = memref.load %arg5[%c6_81, %c1_82] : memref<8x4xf32, #tpu.memory_space<smem>>
    %134 = vector.broadcast %133 : f32 to vector<8x8xf32>
    %135 = arith.mulf %134, %15 : vector<8x8xf32>
    %136 = arith.addf %132, %135 : vector<8x8xf32>
    %c6_83 = arith.constant 6 : index
    %c2_84 = arith.constant 2 : index
    %137 = memref.load %arg5[%c6_83, %c2_84] : memref<8x4xf32, #tpu.memory_space<smem>>
    %138 = vector.broadcast %137 : f32 to vector<8x8xf32>
    %139 = arith.mulf %138, %18 : vector<8x8xf32>
    %140 = arith.addf %136, %139 : vector<8x8xf32>
    %c6_85 = arith.constant 6 : index
    %c3_86 = arith.constant 3 : index
    %141 = memref.load %arg5[%c6_85, %c3_86] : memref<8x4xf32, #tpu.memory_space<smem>>
    %142 = vector.broadcast %141 : f32 to vector<8x8xf32>
    %143 = arith.mulf %142, %21 : vector<8x8xf32>
    %144 = arith.addf %140, %143 : vector<8x8xf32>
    %c0_87 = arith.constant 0 : index
    %c6_88 = arith.constant 6 : index
    %c0_89 = arith.constant 0 : index
    %c0_90 = arith.constant 0 : index
    %145 = vector.load %arg7[%c0_87, %c6_88, %c0_89, %c0_90] : memref<1x8x8x8xf32, #tpu.memory_space<vmem>>, vector<1x1x8x8xf32>
    %146 = vector.shape_cast %145 : vector<1x1x8x8xf32> to vector<8x8xf32>
    %147 = vector.shape_cast %144 : vector<8x8xf32> to vector<1x1x8x8xf32>
    tpu.vector_store %arg7[%c0_87, %c6_88, %c0_89, %c0_90], %147 {strides = array<i32>} : memref<1x8x8x8xf32, #tpu.memory_space<vmem>>, vector<1x1x8x8xf32>,
    %c7 = arith.constant 7 : index
    %c0_91 = arith.constant 0 : index
    %148 = memref.load %arg5[%c7, %c0_91] : memref<8x4xf32, #tpu.memory_space<smem>>
    %149 = vector.broadcast %148 : f32 to vector<8x8xf32>
    %150 = arith.mulf %149, %12 : vector<8x8xf32>
    %c7_92 = arith.constant 7 : index
    %c1_93 = arith.constant 1 : index
    %151 = memref.load %arg5[%c7_92, %c1_93] : memref<8x4xf32, #tpu.memory_space<smem>>
    %152 = vector.broadcast %151 : f32 to vector<8x8xf32>
    %153 = arith.mulf %152, %15 : vector<8x8xf32>
    %154 = arith.addf %150, %153 : vector<8x8xf32>
    %c7_94 = arith.constant 7 : index
    %c2_95 = arith.constant 2 : index
    %155 = memref.load %arg5[%c7_94, %c2_95] : memref<8x4xf32, #tpu.memory_space<smem>>
    %156 = vector.broadcast %155 : f32 to vector<8x8xf32>
    %157 = arith.mulf %156, %18 : vector<8x8xf32>
    %158 = arith.addf %154, %157 : vector<8x8xf32>
    %c7_96 = arith.constant 7 : index
    %c3_97 = arith.constant 3 : index
    %159 = memref.load %arg5[%c7_96, %c3_97] : memref<8x4xf32, #tpu.memory_space<smem>>
    %160 = vector.broadcast %159 : f32 to vector<8x8xf32>
    %161 = arith.mulf %160, %21 : vector<8x8xf32>
    %162 = arith.addf %158, %161 : vector<8x8xf32>
    %c0_98 = arith.constant 0 : index
    %c7_99 = arith.constant 7 : index
    %c0_100 = arith.constant 0 : index
    %c0_101 = arith.constant 0 : index
    %163 = vector.load %arg7[%c0_98, %c7_99, %c0_100, %c0_101] : memref<1x8x8x8xf32, #tpu.memory_space<vmem>>, vector<1x1x8x8xf32>
    %164 = vector.shape_cast %163 : vector<1x1x8x8xf32> to vector<8x8xf32>
    %165 = vector.shape_cast %162 : vector<8x8xf32> to vector<1x1x8x8xf32>
    tpu.vector_store %arg7[%c0_98, %c7_99, %c0_100, %c0_101], %165 {strides = array<i32>} : memref<1x8x8x8xf32, #tpu.memory_space<vmem>>, vector<1x1x8x8xf32>,
    %166 = vector.extract_strided_slice %9 {offsets = [64, 0], sizes = [16, 8], strides = [1, 1]} : vector<128x8xf32> to vector<16x8xf32>
    %167 = arith.truncf %166 : vector<16x8xf32> to vector<16x8xbf16>
    %cst_102 = arith.constant dense<0.000000e+00> : vector<8x8xf32>
    %168 = tpu.matmul %0, %167, %cst_102 {dimension_numbers = #tpu.dot_dimension_numbers<[1], [0], [0], [1], [0, 0, 1, 1], [], []>} : vector<8x16xbf16>, vector<16x8xbf16>, vector<8x8xf32> -> vector<8x8xf32>
    %169 = vector.extract_strided_slice %9 {offsets = [80, 0], sizes = [16, 8], strides = [1, 1]} : vector<128x8xf32> to vector<16x8xf32>
    %170 = arith.truncf %169 : vector<16x8xf32> to vector<16x8xbf16>
    %cst_103 = arith.constant dense<0.000000e+00> : vector<8x8xf32>
    %171 = tpu.matmul %0, %170, %cst_103 {dimension_numbers = #tpu.dot_dimension_numbers<[1], [0], [0], [1], [0, 0, 1, 1], [], []>} : vector<8x16xbf16>, vector<16x8xbf16>, vector<8x8xf32> -> vector<8x8xf32>
    %172 = vector.extract_strided_slice %9 {offsets = [96, 0], sizes = [16, 8], strides = [1, 1]} : vector<128x8xf32> to vector<16x8xf32>
    %173 = arith.truncf %172 : vector<16x8xf32> to vector<16x8xbf16>
    %cst_104 = arith.constant dense<0.000000e+00> : vector<8x8xf32>
    %174 = tpu.matmul %0, %173, %cst_104 {dimension_numbers = #tpu.dot_dimension_numbers<[1], [0], [0], [1], [0, 0, 1, 1], [], []>} : vector<8x16xbf16>, vector<16x8xbf16>, vector<8x8xf32> -> vector<8x8xf32>
    %175 = vector.extract_strided_slice %9 {offsets = [112, 0], sizes = [16, 8], strides = [1, 1]} : vector<128x8xf32> to vector<16x8xf32>
    %176 = arith.truncf %175 : vector<16x8xf32> to vector<16x8xbf16>
    %cst_105 = arith.constant dense<0.000000e+00> : vector<8x8xf32>
    %177 = tpu.matmul %0, %176, %cst_105 {dimension_numbers = #tpu.dot_dimension_numbers<[1], [0], [0], [1], [0, 0, 1, 1], [], []>} : vector<8x16xbf16>, vector<16x8xbf16>, vector<8x8xf32> -> vector<8x8xf32>
    %c0_106 = arith.constant 0 : index
    %c0_107 = arith.constant 0 : index
    %178 = memref.load %arg6[%c0_106, %c0_107] : memref<8x4xf32, #tpu.memory_space<smem>>
    %179 = vector.broadcast %178 : f32 to vector<8x8xf32>
    %180 = arith.mulf %179, %168 : vector<8x8xf32>
    %c0_108 = arith.constant 0 : index
    %c1_109 = arith.constant 1 : index
    %181 = memref.load %arg6[%c0_108, %c1_109] : memref<8x4xf32, #tpu.memory_space<smem>>
    %182 = vector.broadcast %181 : f32 to vector<8x8xf32>
    %183 = arith.mulf %182, %171 : vector<8x8xf32>
    %184 = arith.addf %180, %183 : vector<8x8xf32>
    %c0_110 = arith.constant 0 : index
    %c2_111 = arith.constant 2 : index
    %185 = memref.load %arg6[%c0_110, %c2_111] : memref<8x4xf32, #tpu.memory_space<smem>>
    %186 = vector.broadcast %185 : f32 to vector<8x8xf32>
    %187 = arith.mulf %186, %174 : vector<8x8xf32>
    %188 = arith.addf %184, %187 : vector<8x8xf32>
    %c0_112 = arith.constant 0 : index
    %c3_113 = arith.constant 3 : index
    %189 = memref.load %arg6[%c0_112, %c3_113] : memref<8x4xf32, #tpu.memory_space<smem>>
    %190 = vector.broadcast %189 : f32 to vector<8x8xf32>
    %191 = arith.mulf %190, %177 : vector<8x8xf32>
    %192 = arith.addf %188, %191 : vector<8x8xf32>
    %c0_114 = arith.constant 0 : index
    %c0_115 = arith.constant 0 : index
    %c0_116 = arith.constant 0 : index
    %c0_117 = arith.constant 0 : index
    %193 = vector.load %arg8[%c0_114, %c0_115, %c0_116, %c0_117] : memref<1x8x8x8xf32, #tpu.memory_space<vmem>>, vector<1x1x8x8xf32>
    %194 = vector.shape_cast %193 : vector<1x1x8x8xf32> to vector<8x8xf32>
    %195 = vector.shape_cast %192 : vector<8x8xf32> to vector<1x1x8x8xf32>
    tpu.vector_store %arg8[%c0_114, %c0_115, %c0_116, %c0_117], %195 {strides = array<i32>} : memref<1x8x8x8xf32, #tpu.memory_space<vmem>>, vector<1x1x8x8xf32>,
    %c1_118 = arith.constant 1 : index
    %c0_119 = arith.constant 0 : index
    %196 = memref.load %arg6[%c1_118, %c0_119] : memref<8x4xf32, #tpu.memory_space<smem>>
    %197 = vector.broadcast %196 : f32 to vector<8x8xf32>
    %198 = arith.mulf %197, %168 : vector<8x8xf32>
    %c1_120 = arith.constant 1 : index
    %c1_121 = arith.constant 1 : index
    %199 = memref.load %arg6[%c1_120, %c1_121] : memref<8x4xf32, #tpu.memory_space<smem>>
    %200 = vector.broadcast %199 : f32 to vector<8x8xf32>
    %201 = arith.mulf %200, %171 : vector<8x8xf32>
    %202 = arith.addf %198, %201 : vector<8x8xf32>
    %c1_122 = arith.constant 1 : index
    %c2_123 = arith.constant 2 : index
    %203 = memref.load %arg6[%c1_122, %c2_123] : memref<8x4xf32, #tpu.memory_space<smem>>
    %204 = vector.broadcast %203 : f32 to vector<8x8xf32>
    %205 = arith.mulf %204, %174 : vector<8x8xf32>
    %206 = arith.addf %202, %205 : vector<8x8xf32>
    %c1_124 = arith.constant 1 : index
    %c3_125 = arith.constant 3 : index
    %207 = memref.load %arg6[%c1_124, %c3_125] : memref<8x4xf32, #tpu.memory_space<smem>>
    %208 = vector.broadcast %207 : f32 to vector<8x8xf32>
    %209 = arith.mulf %208, %177 : vector<8x8xf32>
    %210 = arith.addf %206, %209 : vector<8x8xf32>
    %c0_126 = arith.constant 0 : index
    %c1_127 = arith.constant 1 : index
    %c0_128 = arith.constant 0 : index
    %c0_129 = arith.constant 0 : index
    %211 = vector.load %arg8[%c0_126, %c1_127, %c0_128, %c0_129] : memref<1x8x8x8xf32, #tpu.memory_space<vmem>>, vector<1x1x8x8xf32>
    %212 = vector.shape_cast %211 : vector<1x1x8x8xf32> to vector<8x8xf32>
    %213 = vector.shape_cast %210 : vector<8x8xf32> to vector<1x1x8x8xf32>
    tpu.vector_store %arg8[%c0_126, %c1_127, %c0_128, %c0_129], %213 {strides = array<i32>} : memref<1x8x8x8xf32, #tpu.memory_space<vmem>>, vector<1x1x8x8xf32>,
    %c2_130 = arith.constant 2 : index
    %c0_131 = arith.constant 0 : index
    %214 = memref.load %arg6[%c2_130, %c0_131] : memref<8x4xf32, #tpu.memory_space<smem>>
    %215 = vector.broadcast %214 : f32 to vector<8x8xf32>
    %216 = arith.mulf %215, %168 : vector<8x8xf32>
    %c2_132 = arith.constant 2 : index
    %c1_133 = arith.constant 1 : index
    %217 = memref.load %arg6[%c2_132, %c1_133] : memref<8x4xf32, #tpu.memory_space<smem>>
    %218 = vector.broadcast %217 : f32 to vector<8x8xf32>
    %219 = arith.mulf %218, %171 : vector<8x8xf32>
    %220 = arith.addf %216, %219 : vector<8x8xf32>
    %c2_134 = arith.constant 2 : index
    %c2_135 = arith.constant 2 : index
    %221 = memref.load %arg6[%c2_134, %c2_135] : memref<8x4xf32, #tpu.memory_space<smem>>
    %222 = vector.broadcast %221 : f32 to vector<8x8xf32>
    %223 = arith.mulf %222, %174 : vector<8x8xf32>
    %224 = arith.addf %220, %223 : vector<8x8xf32>
    %c2_136 = arith.constant 2 : index
    %c3_137 = arith.constant 3 : index
    %225 = memref.load %arg6[%c2_136, %c3_137] : memref<8x4xf32, #tpu.memory_space<smem>>
    %226 = vector.broadcast %225 : f32 to vector<8x8xf32>
    %227 = arith.mulf %226, %177 : vector<8x8xf32>
    %228 = arith.addf %224, %227 : vector<8x8xf32>
    %c0_138 = arith.constant 0 : index
    %c2_139 = arith.constant 2 : index
    %c0_140 = arith.constant 0 : index
    %c0_141 = arith.constant 0 : index
    %229 = vector.load %arg8[%c0_138, %c2_139, %c0_140, %c0_141] : memref<1x8x8x8xf32, #tpu.memory_space<vmem>>, vector<1x1x8x8xf32>
    %230 = vector.shape_cast %229 : vector<1x1x8x8xf32> to vector<8x8xf32>
    %231 = vector.shape_cast %228 : vector<8x8xf32> to vector<1x1x8x8xf32>
    tpu.vector_store %arg8[%c0_138, %c2_139, %c0_140, %c0_141], %231 {strides = array<i32>} : memref<1x8x8x8xf32, #tpu.memory_space<vmem>>, vector<1x1x8x8xf32>,
    %c3_142 = arith.constant 3 : index
    %c0_143 = arith.constant 0 : index
    %232 = memref.load %arg6[%c3_142, %c0_143] : memref<8x4xf32, #tpu.memory_space<smem>>
    %233 = vector.broadcast %232 : f32 to vector<8x8xf32>
    %234 = arith.mulf %233, %168 : vector<8x8xf32>
    %c3_144 = arith.constant 3 : index
    %c1_145 = arith.constant 1 : index
    %235 = memref.load %arg6[%c3_144, %c1_145] : memref<8x4xf32, #tpu.memory_space<smem>>
    %236 = vector.broadcast %235 : f32 to vector<8x8xf32>
    %237 = arith.mulf %236, %171 : vector<8x8xf32>
    %238 = arith.addf %234, %237 : vector<8x8xf32>
    %c3_146 = arith.constant 3 : index
    %c2_147 = arith.constant 2 : index
    %239 = memref.load %arg6[%c3_146, %c2_147] : memref<8x4xf32, #tpu.memory_space<smem>>
    %240 = vector.broadcast %239 : f32 to vector<8x8xf32>
    %241 = arith.mulf %240, %174 : vector<8x8xf32>
    %242 = arith.addf %238, %241 : vector<8x8xf32>
    %c3_148 = arith.constant 3 : index
    %c3_149 = arith.constant 3 : index
    %243 = memref.load %arg6[%c3_148, %c3_149] : memref<8x4xf32, #tpu.memory_space<smem>>
    %244 = vector.broadcast %243 : f32 to vector<8x8xf32>
    %245 = arith.mulf %244, %177 : vector<8x8xf32>
    %246 = arith.addf %242, %245 : vector<8x8xf32>
    %c0_150 = arith.constant 0 : index
    %c3_151 = arith.constant 3 : index
    %c0_152 = arith.constant 0 : index
    %c0_153 = arith.constant 0 : index
    %247 = vector.load %arg8[%c0_150, %c3_151, %c0_152, %c0_153] : memref<1x8x8x8xf32, #tpu.memory_space<vmem>>, vector<1x1x8x8xf32>
    %248 = vector.shape_cast %247 : vector<1x1x8x8xf32> to vector<8x8xf32>
    %249 = vector.shape_cast %246 : vector<8x8xf32> to vector<1x1x8x8xf32>
    tpu.vector_store %arg8[%c0_150, %c3_151, %c0_152, %c0_153], %249 {strides = array<i32>} : memref<1x8x8x8xf32, #tpu.memory_space<vmem>>, vector<1x1x8x8xf32>,
    %c4_154 = arith.constant 4 : index
    %c0_155 = arith.constant 0 : index
    %250 = memref.load %arg6[%c4_154, %c0_155] : memref<8x4xf32, #tpu.memory_space<smem>>
    %251 = vector.broadcast %250 : f32 to vector<8x8xf32>
    %252 = arith.mulf %251, %168 : vector<8x8xf32>
    %c4_156 = arith.constant 4 : index
    %c1_157 = arith.constant 1 : index
    %253 = memref.load %arg6[%c4_156, %c1_157] : memref<8x4xf32, #tpu.memory_space<smem>>
    %254 = vector.broadcast %253 : f32 to vector<8x8xf32>
    %255 = arith.mulf %254, %171 : vector<8x8xf32>
    %256 = arith.addf %252, %255 : vector<8x8xf32>
    %c4_158 = arith.constant 4 : index
    %c2_159 = arith.constant 2 : index
    %257 = memref.load %arg6[%c4_158, %c2_159] : memref<8x4xf32, #tpu.memory_space<smem>>
    %258 = vector.broadcast %257 : f32 to vector<8x8xf32>
    %259 = arith.mulf %258, %174 : vector<8x8xf32>
    %260 = arith.addf %256, %259 : vector<8x8xf32>
    %c4_160 = arith.constant 4 : index
    %c3_161 = arith.constant 3 : index
    %261 = memref.load %arg6[%c4_160, %c3_161] : memref<8x4xf32, #tpu.memory_space<smem>>
    %262 = vector.broadcast %261 : f32 to vector<8x8xf32>
    %263 = arith.mulf %262, %177 : vector<8x8xf32>
    %264 = arith.addf %260, %263 : vector<8x8xf32>
    %c0_162 = arith.constant 0 : index
    %c4_163 = arith.constant 4 : index
    %c0_164 = arith.constant 0 : index
    %c0_165 = arith.constant 0 : index
    %265 = vector.load %arg8[%c0_162, %c4_163, %c0_164, %c0_165] : memref<1x8x8x8xf32, #tpu.memory_space<vmem>>, vector<1x1x8x8xf32>
    %266 = vector.shape_cast %265 : vector<1x1x8x8xf32> to vector<8x8xf32>
    %267 = vector.shape_cast %264 : vector<8x8xf32> to vector<1x1x8x8xf32>
    tpu.vector_store %arg8[%c0_162, %c4_163, %c0_164, %c0_165], %267 {strides = array<i32>} : memref<1x8x8x8xf32, #tpu.memory_space<vmem>>, vector<1x1x8x8xf32>,
    %c5_166 = arith.constant 5 : index
    %c0_167 = arith.constant 0 : index
    %268 = memref.load %arg6[%c5_166, %c0_167] : memref<8x4xf32, #tpu.memory_space<smem>>
    %269 = vector.broadcast %268 : f32 to vector<8x8xf32>
    %270 = arith.mulf %269, %168 : vector<8x8xf32>
    %c5_168 = arith.constant 5 : index
    %c1_169 = arith.constant 1 : index
    %271 = memref.load %arg6[%c5_168, %c1_169] : memref<8x4xf32, #tpu.memory_space<smem>>
    %272 = vector.broadcast %271 : f32 to vector<8x8xf32>
    %273 = arith.mulf %272, %171 : vector<8x8xf32>
    %274 = arith.addf %270, %273 : vector<8x8xf32>
    %c5_170 = arith.constant 5 : index
    %c2_171 = arith.constant 2 : index
    %275 = memref.load %arg6[%c5_170, %c2_171] : memref<8x4xf32, #tpu.memory_space<smem>>
    %276 = vector.broadcast %275 : f32 to vector<8x8xf32>
    %277 = arith.mulf %276, %174 : vector<8x8xf32>
    %278 = arith.addf %274, %277 : vector<8x8xf32>
    %c5_172 = arith.constant 5 : index
    %c3_173 = arith.constant 3 : index
    %279 = memref.load %arg6[%c5_172, %c3_173] : memref<8x4xf32, #tpu.memory_space<smem>>
    %280 = vector.broadcast %279 : f32 to vector<8x8xf32>
    %281 = arith.mulf %280, %177 : vector<8x8xf32>
    %282 = arith.addf %278, %281 : vector<8x8xf32>
    %c0_174 = arith.constant 0 : index
    %c5_175 = arith.constant 5 : index
    %c0_176 = arith.constant 0 : index
    %c0_177 = arith.constant 0 : index
    %283 = vector.load %arg8[%c0_174, %c5_175, %c0_176, %c0_177] : memref<1x8x8x8xf32, #tpu.memory_space<vmem>>, vector<1x1x8x8xf32>
    %284 = vector.shape_cast %283 : vector<1x1x8x8xf32> to vector<8x8xf32>
    %285 = vector.shape_cast %282 : vector<8x8xf32> to vector<1x1x8x8xf32>
    tpu.vector_store %arg8[%c0_174, %c5_175, %c0_176, %c0_177], %285 {strides = array<i32>} : memref<1x8x8x8xf32, #tpu.memory_space<vmem>>, vector<1x1x8x8xf32>,
    %c6_178 = arith.constant 6 : index
    %c0_179 = arith.constant 0 : index
    %286 = memref.load %arg6[%c6_178, %c0_179] : memref<8x4xf32, #tpu.memory_space<smem>>
    %287 = vector.broadcast %286 : f32 to vector<8x8xf32>
    %288 = arith.mulf %287, %168 : vector<8x8xf32>
    %c6_180 = arith.constant 6 : index
    %c1_181 = arith.constant 1 : index
    %289 = memref.load %arg6[%c6_180, %c1_181] : memref<8x4xf32, #tpu.memory_space<smem>>
    %290 = vector.broadcast %289 : f32 to vector<8x8xf32>
    %291 = arith.mulf %290, %171 : vector<8x8xf32>
    %292 = arith.addf %288, %291 : vector<8x8xf32>
    %c6_182 = arith.constant 6 : index
    %c2_183 = arith.constant 2 : index
    %293 = memref.load %arg6[%c6_182, %c2_183] : memref<8x4xf32, #tpu.memory_space<smem>>
    %294 = vector.broadcast %293 : f32 to vector<8x8xf32>
    %295 = arith.mulf %294, %174 : vector<8x8xf32>
    %296 = arith.addf %292, %295 : vector<8x8xf32>
    %c6_184 = arith.constant 6 : index
    %c3_185 = arith.constant 3 : index
    %297 = memref.load %arg6[%c6_184, %c3_185] : memref<8x4xf32, #tpu.memory_space<smem>>
    %298 = vector.broadcast %297 : f32 to vector<8x8xf32>
    %299 = arith.mulf %298, %177 : vector<8x8xf32>
    %300 = arith.addf %296, %299 : vector<8x8xf32>
    %c0_186 = arith.constant 0 : index
    %c6_187 = arith.constant 6 : index
    %c0_188 = arith.constant 0 : index
    %c0_189 = arith.constant 0 : index
    %301 = vector.load %arg8[%c0_186, %c6_187, %c0_188, %c0_189] : memref<1x8x8x8xf32, #tpu.memory_space<vmem>>, vector<1x1x8x8xf32>
    %302 = vector.shape_cast %301 : vector<1x1x8x8xf32> to vector<8x8xf32>
    %303 = vector.shape_cast %300 : vector<8x8xf32> to vector<1x1x8x8xf32>
    tpu.vector_store %arg8[%c0_186, %c6_187, %c0_188, %c0_189], %303 {strides = array<i32>} : memref<1x8x8x8xf32, #tpu.memory_space<vmem>>, vector<1x1x8x8xf32>,
    %c7_190 = arith.constant 7 : index
    %c0_191 = arith.constant 0 : index
    %304 = memref.load %arg6[%c7_190, %c0_191] : memref<8x4xf32, #tpu.memory_space<smem>>
    %305 = vector.broadcast %304 : f32 to vector<8x8xf32>
    %306 = arith.mulf %305, %168 : vector<8x8xf32>
    %c7_192 = arith.constant 7 : index
    %c1_193 = arith.constant 1 : index
    %307 = memref.load %arg6[%c7_192, %c1_193] : memref<8x4xf32, #tpu.memory_space<smem>>
    %308 = vector.broadcast %307 : f32 to vector<8x8xf32>
    %309 = arith.mulf %308, %171 : vector<8x8xf32>
    %310 = arith.addf %306, %309 : vector<8x8xf32>
    %c7_194 = arith.constant 7 : index
    %c2_195 = arith.constant 2 : index
    %311 = memref.load %arg6[%c7_194, %c2_195] : memref<8x4xf32, #tpu.memory_space<smem>>
    %312 = vector.broadcast %311 : f32 to vector<8x8xf32>
    %313 = arith.mulf %312, %174 : vector<8x8xf32>
    %314 = arith.addf %310, %313 : vector<8x8xf32>
    %c7_196 = arith.constant 7 : index
    %c3_197 = arith.constant 3 : index
    %315 = memref.load %arg6[%c7_196, %c3_197] : memref<8x4xf32, #tpu.memory_space<smem>>
    %316 = vector.broadcast %315 : f32 to vector<8x8xf32>
    %317 = arith.mulf %316, %177 : vector<8x8xf32>
    %318 = arith.addf %314, %317 : vector<8x8xf32>
    %c0_198 = arith.constant 0 : index
    %c7_199 = arith.constant 7 : index
    %c0_200 = arith.constant 0 : index
    %c0_201 = arith.constant 0 : index
    %319 = vector.load %arg8[%c0_198, %c7_199, %c0_200, %c0_201] : memref<1x8x8x8xf32, #tpu.memory_space<vmem>>, vector<1x1x8x8xf32>
    %320 = vector.shape_cast %319 : vector<1x1x8x8xf32> to vector<8x8xf32>
    %321 = vector.shape_cast %318 : vector<8x8xf32> to vector<1x1x8x8xf32>
    tpu.vector_store %arg8[%c0_198, %c7_199, %c0_200, %c0_201], %321 {strides = array<i32>} : memref<1x8x8x8xf32, #tpu.memory_space<vmem>>, vector<1x1x8x8xf32>,
    return
  }
  func.func @transform_0(%arg0: i32) -> (i32, i32, i32) {
    %c0_i32 = arith.constant 0 : i32
    %c0_i32_0 = arith.constant 0 : i32
    %c0_i32_1 = arith.constant 0 : i32
    return %arg0, %c0_i32, %c0_i32_0 : i32, i32, i32
  }
  func.func @transform_1(%arg0: i32) -> (i32, i32, i32) {
    %c0_i32 = arith.constant 0 : i32
    %c0_i32_0 = arith.constant 0 : i32
    %c0_i32_1 = arith.constant 0 : i32
    return %arg0, %c0_i32, %c0_i32_0 : i32, i32, i32
  }
  func.func @transform_2(%arg0: i32) -> (i32, i32) {
    %c0_i32 = arith.constant 0 : i32
    %c0_i32_0 = arith.constant 0 : i32
    %c0_i32_1 = arith.constant 0 : i32
    return %c0_i32, %c0_i32_0 : i32, i32
  }
  func.func @transform_3(%arg0: i32) -> (i32, i32) {
    %c0_i32 = arith.constant 0 : i32
    %c0_i32_0 = arith.constant 0 : i32
    %c0_i32_1 = arith.constant 0 : i32
    return %c0_i32, %c0_i32_0 : i32, i32
  }
  func.func @transform_4(%arg0: i32) -> (i32, i32) {
    %c0_i32 = arith.constant 0 : i32
    %c0_i32_0 = arith.constant 0 : i32
    %c0_i32_1 = arith.constant 0 : i32
    return %c0_i32, %c0_i32_0 : i32, i32
  }
  func.func @transform_5(%arg0: i32) -> (i32, i32) {
    %c0_i32 = arith.constant 0 : i32
    %c0_i32_0 = arith.constant 0 : i32
    %c0_i32_1 = arith.constant 0 : i32
    return %c0_i32, %c0_i32_0 : i32, i32
  }
  func.func @transform_6(%arg0: i32) -> (i32, i32, i32, i32) {
    %c0_i32 = arith.constant 0 : i32
    %c0_i32_0 = arith.constant 0 : i32
    %c0_i32_1 = arith.constant 0 : i32
    %c0_i32_2 = arith.constant 0 : i32
    return %arg0, %c0_i32, %c0_i32_0, %c0_i32_1 : i32, i32, i32, i32
  }
  func.func @transform_7(%arg0: i32) -> (i32, i32, i32, i32) {
    %c0_i32 = arith.constant 0 : i32
    %c0_i32_0 = arith.constant 0 : i32
    %c0_i32_1 = arith.constant 0 : i32
    %c0_i32_2 = arith.constant 0 : i32
    return %arg0, %c0_i32, %c0_i32_0, %c0_i32_1 : i32, i32, i32, i32
  }
}

</mosaic_0001>

<llo_original>
// kernel: downsample_forward.1
$region0: #{downsample_forward.1}
  #allocation0 [shape = 'u32[]', space=smem, size = 0x4, offset = 0x4, fixed_abs, tag = 'smem constant byte address 0x4 - core index']
  #allocation1 [shape = 'u32[144,128]{1,0:T(1,128)}', space=vmem, size = 0x12000, scoped, tag = 'internal scratch']
  %s0 = inlined_call_operand.hbm [shape: f32[2,64,16], index: 0, kind: input, shape index: {}]
  %s1 = inlined_call_operand.hbm [shape: f32[2,64,16], index: 1, kind: input, shape index: {}]
  %s2 = inlined_call_operand.vmem [shape: bf16[8,16], index: 2, kind: input, shape index: {}]
  %s3 = inlined_call_operand.vmem [shape: bf16[16,8], index: 3, kind: input, shape index: {}]
  %s4 = inlined_call_operand.vmem [shape: f32[8,4], index: 4, kind: input, shape index: {}]
  %s5 = inlined_call_operand.vmem [shape: f32[8,4], index: 5, kind: input, shape index: {}]
  %s6 = inlined_call_operand.hbm [shape: f32[2,8,8,8], index: 6, kind: output, shape index: {0}]
  %s7 = inlined_call_operand.hbm [shape: f32[2,8,8,8], index: 7, kind: output, shape index: {1}]
  %8 = xla_tuple %s6, %s7
  %s9 = sld [smem:[#allocation0]]
  $region81: #{downsample_forward.1} parent=0
    _
  %s11 = ssub.s32 1, %s9
  %s12 = scalar_select 0, %s11, %s9
  $region1: #{downsample_forward.1} parent=0
    #allocation2 [shape = 'u8[65536]{0}', space=vmem, size = 0x10000, scoped, tag = 'input window, operand 0']
    #allocation3 [shape = 's32[2]{0}', space=sflag, size = 0x8, scoped, tag = 'scoped memory for downsample_forward.1']
    #allocation4 [shape = 's32[2]{0}', space=sflag, size = 0x8, scoped, tag = 'scoped memory for downsample_forward.1']
    #allocation5 [shape = 's32[2]{0}', space=sflag, size = 0x8, scoped, tag = 'scoped memory for downsample_forward.1']
    #allocation6 [shape = 'u8[65536]{0}', space=vmem, size = 0x10000, scoped, tag = 'input window, operand 1']
    #allocation7 [shape = 's32[2]{0}', space=sflag, size = 0x8, scoped, tag = 'scoped memory for downsample_forward.1']
    #allocation8 [shape = 'u8[4096]{0}', space=smem, size = 0x1000, scoped, tag = 'input window, operand 4, single buffered']
    #allocation9 [shape = 'u8[4096]{0}', space=smem, size = 0x1000, scoped, tag = 'input window, operand 5, single buffered']
    #allocation10 [shape = 's32[1]{0}', space=sflag, size = 0x4, scoped, tag = 'scoped memory for downsample_forward.1']
    #allocation11 [shape = 'u8[65536]{0}', space=vmem, size = 0x10000, scoped, tag = 'output window, operand 0']
    #allocation12 [shape = 'u8[65536]{0}', space=vmem, size = 0x10000, scoped, tag = 'output window, operand 1']
    #allocation13 [shape = 's32[2]{0}', space=sflag, size = 0x8, scoped, tag = 'scoped memory for downsample_forward.1']
    %13 = vsyncpa [#allocation3], 0
    %s14 = scalar_lea.sflag [#allocation3], 1
    %15 = vsyncpa %s14, 0
    %16 = vsyncpa [#allocation7], 0
    %s17 = scalar_lea.sflag [#allocation7], 1
    %18 = vsyncpa %s17, 0
    %19 = vsyncpa [#allocation5], 0
    %20 = vsyncpa [#allocation10], 0
    %21 = vsyncpa [#allocation4], 0
    %s22 = scalar_lea.sflag [#allocation4], 1
    %23 = vsyncpa %s22, 0
    %24 = vsyncpa [#allocation13], 0
    %s25 = scalar_lea.sflag [#allocation13], 1
    %26 = vsyncpa %s25, 0
    loop: start=0, step=1, limit=4
    $region2: #{downsample_forward.1} parent=1 // loop_pre_header
      _
    $region3: #{downsample_forward.1} parent=1 // loop_header
      %s28 = sphi 0, %s32
      %p29 = scmp.ge.s32.totalorder %s28, 4
      %s38 = sphi 0, %s40
      %s41 = sphi 0, %s38
      %s42 = sphi 0, %s41
      %s58 = sphi 0, %s42
      %s64 = sphi 0, %s66
      %s67 = sphi 0, %s64
      %s68 = sphi 0, %s67
      %s84 = sphi 0, %s68
      %s88 = sphi 0, %s88
      %s90 = sphi 0, %s88
      %s91 = sphi 0, %s90
      %s105 = sphi 0, %s91
      %s109 = sphi 0, %s109
      %s111 = sphi 0, %s109
      %s112 = sphi 0, %s111
      %s126 = sphi 0, %s112
      %s130 = sphi 0, %s130
      %s132 = sphi 0, %s130
      %s133 = sphi 0, %s132
      %s147 = sphi 0, %s133
      %s151 = sphi 0, %s151
      %s153 = sphi 0, %s151
      %s154 = sphi 0, %s153
      %s168 = sphi 0, %s154
      %s174 = sphi 0, %s176
      %s177 = sphi 0, %s174
      %s178 = sphi 0, %s177
      %s194 = sphi 0, %s178
      %s200 = sphi 0, %s202
      %s203 = sphi 0, %s200
      %s204 = sphi 0, %s203
      %s220 = sphi 0, %s204
    $region4: #{downsample_forward.1} parent=1 // loop_header_branch
      %31 = sbr.rel (%p29) target = $region8
    $region5: #{downsample_forward.1} parent=1 // loop_body
      %s33 = ssub.s32 %s28, 1
      %s34 = ssub.s32 %s28, 2
      %s35 = sadd.s32 %s28, 1
      %s36 = ssub.s32 %s28, %s35
      %p37 = scmp.eq.s32.totalorder %s36, 0
      %s39 = sadd.s32 %s38, 1
      %s40 = scalar_select %p37, %s38, %s39
      %p43 = pneg %p37
      %p44 = scmp.eq.s32.totalorder %s28, 1
      %p45 = por %p43, %p44
      %p46 = scmp.ne.s32.totalorder %s38, %s41
      %p47 = scmp.eq.s32.totalorder %s28, 0
      %p48 = por %p46, %p47
      %p49 = scmp.ne.s32.totalorder %s38, %s41
      %p50 = scmp.eq.s32.totalorder %s33, 1
      %p51 = por %p49, %p50
      %p52 = scmp.ne.s32.totalorder %s41, %s42
      %p53 = scmp.eq.s32.totalorder %s33, 0
      %p54 = por %p52, %p53
      %p55 = scmp.ne.s32.totalorder %s41, %s42
      %p56 = scmp.eq.s32.totalorder %s34, 1
      %p57 = por %p55, %p56
      %p59 = scmp.ne.s32.totalorder %s42, %s58
      %p60 = scmp.eq.s32.totalorder %s34, 0
      %p61 = por %p59, %p60
      %s62 = ssub.s32 %s28, %s35
      %p63 = scmp.eq.s32.totalorder %s62, 0
      %s65 = sadd.s32 %s64, 1
      %s66 = scalar_select %p63, %s64, %s65
      %p69 = pneg %p63
      %p70 = scmp.eq.s32.totalorder %s28, 1
      %p71 = por %p69, %p70
      %p72 = scmp.ne.s32.totalorder %s64, %s67
      %p73 = scmp.eq.s32.totalorder %s28, 0
      %p74 = por %p72, %p73
      %p75 = scmp.ne.s32.totalorder %s64, %s67
      %p76 = scmp.eq.s32.totalorder %s33, 1
      %p77 = por %p75, %p76
      %p78 = scmp.ne.s32.totalorder %s67, %s68
      %p79 = scmp.eq.s32.totalorder %s33, 0
      %p80 = por %p78, %p79
      %p81 = scmp.ne.s32.totalorder %s67, %s68
      %p82 = scmp.eq.s32.totalorder %s34, 1
      %p83 = por %p81, %p82
      %p85 = scmp.ne.s32.totalorder %s68, %s84
      %p86 = scmp.eq.s32.totalorder %s34, 0
      %p87 = por %p85, %p86
      %s89 = sadd.s32 %s88, 1
      %p92 = scmp.eq.s32.totalorder %s28, 1
      %p93 = scmp.ne.s32.totalorder %s88, %s90
      %p94 = scmp.eq.s32.totalorder %s28, 0
      %p95 = por %p93, %p94
      %p96 = scmp.ne.s32.totalorder %s88, %s90
      %p97 = scmp.eq.s32.totalorder %s33, 1
      %p98 = por %p96, %p97
      %p99 = scmp.ne.s32.totalorder %s90, %s91
      %p100 = scmp.eq.s32.totalorder %s33, 0
      %p101 = por %p99, %p100
      %p102 = scmp.ne.s32.totalorder %s90, %s91
      %p103 = scmp.eq.s32.totalorder %s34, 1
      %p104 = por %p102, %p103
      %p106 = scmp.ne.s32.totalorder %s91, %s105
      %p107 = scmp.eq.s32.totalorder %s34, 0
      %p108 = por %p106, %p107
      %s110 = sadd.s32 %s109, 1
      %p113 = scmp.eq.s32.totalorder %s28, 1
      %p114 = scmp.ne.s32.totalorder %s109, %s111
      %p115 = scmp.eq.s32.totalorder %s28, 0
      %p116 = por %p114, %p115
      %p117 = scmp.ne.s32.totalorder %s109, %s111
      %p118 = scmp.eq.s32.totalorder %s33, 1
      %p119 = por %p117, %p118
      %p120 = scmp.ne.s32.totalorder %s111, %s112
      %p121 = scmp.eq.s32.totalorder %s33, 0
      %p122 = por %p120, %p121
      %p123 = scmp.ne.s32.totalorder %s111, %s112
      %p124 = scmp.eq.s32.totalorder %s34, 1
      %p125 = por %p123, %p124
      %p127 = scmp.ne.s32.totalorder %s112, %s126
      %p128 = scmp.eq.s32.totalorder %s34, 0
      %p129 = por %p127, %p128
      %s131 = sadd.s32 %s130, 1
      %p134 = scmp.eq.s32.totalorder %s28, 1
      %p135 = scmp.ne.s32.totalorder %s130, %s132
      %p136 = scmp.eq.s32.totalorder %s28, 0
      %p137 = por %p135, %p136
      %p138 = scmp.ne.s32.totalorder %s130, %s132
      %p139 = scmp.eq.s32.totalorder %s33, 1
      %p140 = por %p138, %p139
      %p141 = scmp.ne.s32.totalorder %s132, %s133
      %p142 = scmp.eq.s32.totalorder %s33, 0
      %p143 = por %p141, %p142
      %p144 = scmp.ne.s32.totalorder %s132, %s133
      %p145 = scmp.eq.s32.totalorder %s34, 1
      %p146 = por %p144, %p145
      %p148 = scmp.ne.s32.totalorder %s133, %s147
      %p149 = scmp.eq.s32.totalorder %s34, 0
      %p150 = por %p148, %p149
      %s152 = sadd.s32 %s151, 1
      %p155 = scmp.eq.s32.totalorder %s28, 1
      %p156 = scmp.ne.s32.totalorder %s151, %s153
      %p157 = scmp.eq.s32.totalorder %s28, 0
      %p158 = por %p156, %p157
      %p159 = scmp.ne.s32.totalorder %s151, %s153
      %p160 = scmp.eq.s32.totalorder %s33, 1
      %p161 = por %p159, %p160
      %p162 = scmp.ne.s32.totalorder %s153, %s154
      %p163 = scmp.eq.s32.totalorder %s33, 0
      %p164 = por %p162, %p163
      %p165 = scmp.ne.s32.totalorder %s153, %s154
      %p166 = scmp.eq.s32.totalorder %s34, 1
      %p167 = por %p165, %p166
      %p169 = scmp.ne.s32.totalorder %s154, %s168
      %p170 = scmp.eq.s32.totalorder %s34, 0
      %p171 = por %p169, %p170
      %s172 = ssub.s32 %s28, %s35
      %p173 = scmp.eq.s32.totalorder %s172, 0
      %s175 = sadd.s32 %s174, 1
      %s176 = scalar_select %p173, %s174, %s175
      %p179 = pneg %p173
      %p180 = scmp.eq.s32.totalorder %s28, 1
      %p181 = por %p179, %p180
      %p182 = scmp.ne.s32.totalorder %s174, %s177
      %p183 = scmp.eq.s32.totalorder %s28, 0
      %p184 = por %p182, %p183
      %p185 = scmp.ne.s32.totalorder %s174, %s177
      %p186 = scmp.eq.s32.totalorder %s33, 1
      %p187 = por %p185, %p186
      %p188 = scmp.ne.s32.totalorder %s177, %s178
      %p189 = scmp.eq.s32.totalorder %s33, 0
      %p190 = por %p188, %p189
      %p191 = scmp.ne.s32.totalorder %s177, %s178
      %p192 = scmp.eq.s32.totalorder %s34, 1
      %p193 = por %p191, %p192
      %p195 = scmp.ne.s32.totalorder %s178, %s194
      %p196 = scmp.eq.s32.totalorder %s34, 0
      %p197 = por %p195, %p196
      %s198 = ssub.s32 %s28, %s35
      %p199 = scmp.eq.s32.totalorder %s198, 0
      %s201 = sadd.s32 %s200, 1
      %s202 = scalar_select %p199, %s200, %s201
      %p205 = pneg %p199
      %p206 = scmp.eq.s32.totalorder %s28, 1
      %p207 = por %p205, %p206
      %p208 = scmp.ne.s32.totalorder %s200, %s203
      %p209 = scmp.eq.s32.totalorder %s28, 0
      %p210 = por %p208, %p209
      %p211 = scmp.ne.s32.totalorder %s200, %s203
      %p212 = scmp.eq.s32.totalorder %s33, 1
      %p213 = por %p211, %p212
      %p214 = scmp.ne.s32.totalorder %s203, %s204
      %p215 = scmp.eq.s32.totalorder %s33, 0
      %p216 = por %p214, %p215
      %p217 = scmp.ne.s32.totalorder %s203, %s204
      %p218 = scmp.eq.s32.totalorder %s34, 1
      %p219 = por %p217, %p218
      %p221 = scmp.ne.s32.totalorder %s204, %s220
      %p222 = scmp.eq.s32.totalorder %s34, 0
      %p223 = por %p221, %p222
      %p224 = scmp.le.s32.totalorder 1, %s28
      %p225 = scmp.lt.s32.totalorder %s28, 3
      %p226 = pnand %p224, %p225
      %p227 = pneg %p226
      // Predicated region
      $region9: #{downsample_forward.1} parent=5 // pred_check
        _
      $region10: #{downsample_forward.1} parent=5 // pred_check_branch
        %229 = sbr.rel (%p226) target = $region12
      $region11: #{downsample_forward.1} parent=5 // pred_region
        %s230 = ssub.s32 %s28, 1
        // Predicated region
        $region13: #{downsample_forward.1} parent=11 // pred_check
          %p231 = pneg %p101
        $region14: #{downsample_forward.1} parent=11 // pred_check_branch
          %233 = sbr.rel (%p231) target = $region16
        $region15: #{downsample_forward.1} parent=11 // pred_region
          _
        $region16: #{downsample_forward.1} parent=11 // pred_fallthru
          _
        // Predicated region
        $region17: #{downsample_forward.1} parent=11 // pred_check
          %p234 = pneg %p122
        $region18: #{downsample_forward.1} parent=11 // pred_check_branch
          %236 = sbr.rel (%p234) target = $region20
        $region19: #{downsample_forward.1} parent=11 // pred_region
          _
        $region20: #{downsample_forward.1} parent=11 // pred_fallthru
          _
        // Predicated region
        $region21: #{downsample_forward.1} parent=11 // pred_check
          %p237 = pneg %p143
        $region22: #{downsample_forward.1} parent=11 // pred_check_branch
          %239 = sbr.rel (%p237) target = $region24
        $region23: #{downsample_forward.1} parent=11 // pred_region
          %s241 = ssub.s32 128, 128
          %242 = vsyncadd [#allocation5], %s241
          %s244 = sshll.u32 %s4, 4
          %s245 = int_to_ptr.vmem [resolvable:$true] %s244
          %247 = dma.vmem_to_smem %s245, 128, [#allocation8], [#allocation5]
        $region24: #{downsample_forward.1} parent=11 // pred_fallthru
          _
        // Predicated region
        $region25: #{downsample_forward.1} parent=11 // pred_check
          %p248 = pneg %p164
        $region26: #{downsample_forward.1} parent=11 // pred_check_branch
          %250 = sbr.rel (%p248) target = $region28
        $region27: #{downsample_forward.1} parent=11 // pred_region
          %s252 = ssub.s32 128, 128
          %253 = vsyncadd [#allocation10], %s252
          %s255 = sshll.u32 %s5, 4
          %s256 = int_to_ptr.vmem [resolvable:$true] %s255
          %258 = dma.vmem_to_smem %s256, 128, [#allocation9], [#allocation10]
        $region28: #{downsample_forward.1} parent=11 // pred_fallthru
          _
      $region12: #{downsample_forward.1} parent=5 // pred_fallthru
        _
      %p259 = scmp.lt.s32.totalorder %s28, 2
      // Predicated region
      $region29: #{downsample_forward.1} parent=5 // pred_check
        %p260 = pneg %p259
      $region30: #{downsample_forward.1} parent=5 // pred_check_branch
        %262 = sbr.rel (%p260) target = $region32
      $region31: #{downsample_forward.1} parent=5 // pred_region
        // Predicated region
        $region33: #{downsample_forward.1} parent=31 // pred_check
          %p263 = pneg %p48
        $region34: #{downsample_forward.1} parent=31 // pred_check_branch
          %265 = sbr.rel (%p263) target = $region36
        $region35: #{downsample_forward.1} parent=31 // pred_region
          %s266 = sand.u32 %s38, 1
          %s267 = scalar_lea.sflag [#allocation3], %s266
          %s268 = sand.u32 %s38, 1
          %s269 = smul.addr %s268, 64
          %s270 = scalar_lea.vmem [#allocation2], %s269
          %s272 = ssub.s32 1024, 1024
          %273 = vsyncadd %s267, %s272
          %s274 = smul.addr %s28, 8
          %s275 = smul.addr %s274, 128
          %s276 = scalar_lea.hbm %s0, %s275
          %s277 = sshll.u32 %s270, 4
          %s278 = int_to_ptr.vmem [resolvable:$true] %s277
          %283 = dma.hbm_to_vmem [thread:$0]  %s276, 1024, %s278, %s267, 128, 128, 8
        $region36: #{downsample_forward.1} parent=31 // pred_fallthru
          _
        // Predicated region
        $region37: #{downsample_forward.1} parent=31 // pred_check
          %p284 = pneg %p74
        $region38: #{downsample_forward.1} parent=31 // pred_check_branch
          %286 = sbr.rel (%p284) target = $region40
        $region39: #{downsample_forward.1} parent=31 // pred_region
          %s287 = sand.u32 %s64, 1
          %s288 = scalar_lea.sflag [#allocation7], %s287
          %s289 = sand.u32 %s64, 1
          %s290 = smul.addr %s289, 64
          %s291 = scalar_lea.vmem [#allocation6], %s290
          %s293 = ssub.s32 1024, 1024
          %294 = vsyncadd %s288, %s293
          %s295 = smul.addr %s28, 8
          %s296 = smul.addr %s295, 128
          %s297 = scalar_lea.hbm %s1, %s296
          %s298 = sshll.u32 %s291, 4
          %s299 = int_to_ptr.vmem [resolvable:$true] %s298
          %304 = dma.hbm_to_vmem [thread:$0]  %s297, 1024, %s299, %s288, 128, 128, 8
        $region40: #{downsample_forward.1} parent=31 // pred_fallthru
          _
      $region32: #{downsample_forward.1} parent=5 // pred_fallthru
        _
      %p305 = scmp.le.s32.totalorder 1, %s28
      %p306 = scmp.lt.s32.totalorder %s28, 3
      %p307 = pnand %p305, %p306
      %p308 = pneg %p307
      // Predicated region
      $region41: #{downsample_forward.1} parent=5 // pred_check
        _
      $region42: #{downsample_forward.1} parent=5 // pred_check_branch
        %310 = sbr.rel (%p307) target = $region44
      $region43: #{downsample_forward.1} parent=5 // pred_region
        %s311 = ssub.s32 %s28, 1
        %s312 = sand.u32 %s41, 1
        %s313 = scalar_lea.sflag [#allocation3], %s312
        %s314 = sand.u32 %s41, 1
        %s315 = smul.addr %s314, 64
        %s316 = scalar_lea.vmem [#allocation2], %s315
        // Predicated region
        $region45: #{downsample_forward.1} parent=43 // pred_check
          %p317 = pneg %p54
        $region46: #{downsample_forward.1} parent=43 // pred_check_branch
          %319 = sbr.rel (%p317) target = $region48
        $region47: #{downsample_forward.1} parent=43 // pred_region
          %320 = dma.done %s313, 1024
        $region48: #{downsample_forward.1} parent=43 // pred_fallthru
          _
        %s321 = sand.u32 %s67, 1
        %s322 = scalar_lea.sflag [#allocation7], %s321
        %s323 = sand.u32 %s67, 1
        %s324 = smul.addr %s323, 64
        %s325 = scalar_lea.vmem [#allocation6], %s324
        // Predicated region
        $region49: #{downsample_forward.1} parent=43 // pred_check
          %p326 = pneg %p80
        $region50: #{downsample_forward.1} parent=43 // pred_check_branch
          %328 = sbr.rel (%p326) target = $region52
        $region51: #{downsample_forward.1} parent=43 // pred_region
          %329 = dma.done %s322, 1024
        $region52: #{downsample_forward.1} parent=43 // pred_fallthru
          _
        // Predicated region
        $region53: #{downsample_forward.1} parent=43 // pred_check
          %p330 = pneg %p143
        $region54: #{downsample_forward.1} parent=43 // pred_check_branch
          %332 = sbr.rel (%p330) target = $region56
        $region55: #{downsample_forward.1} parent=43 // pred_region
          %333 = dma.done [#allocation5], 128
        $region56: #{downsample_forward.1} parent=43 // pred_fallthru
          _
        // Predicated region
        $region57: #{downsample_forward.1} parent=43 // pred_check
          %p334 = pneg %p164
        $region58: #{downsample_forward.1} parent=43 // pred_check_branch
          %336 = sbr.rel (%p334) target = $region60
        $region59: #{downsample_forward.1} parent=43 // pred_region
          %337 = dma.done [#allocation10], 128
        $region60: #{downsample_forward.1} parent=43 // pred_fallthru
          _
        %338 = sfence
        %s339 = sand.u32 %s41, 1
        %s340 = scalar_lea.sflag [#allocation3], %s339
        %s341 = sand.u32 %s41, 1
        %s342 = smul.addr %s341, 64
        %s343 = scalar_lea.vmem [#allocation2], %s342
        %p344 = pneg %p54
        %p345 = pneg %p51
        %s346 = sand.u32 %s67, 1
        %s347 = scalar_lea.sflag [#allocation7], %s346
        %s348 = sand.u32 %s67, 1
        %s349 = smul.addr %s348, 64
        %s350 = scalar_lea.vmem [#allocation6], %s349
        %p351 = pneg %p80
        %p352 = pneg %p77
        %p353 = pneg %p101
        %p354 = pneg %p98
        %p355 = pneg %p122
        %p356 = pneg %p119
        %p357 = pneg %p143
        %p358 = pneg %p140
        %p359 = pneg %p164
        %p360 = pneg %p161
        %p361 = pneg %p190
        %p362 = pneg %p187
        %s363 = sand.u32 %s177, 1
        %s364 = scalar_lea.sflag [#allocation4], %s363
        %s365 = sand.u32 %s177, 1
        %s366 = smul.addr %s365, 64
        %s367 = scalar_lea.vmem [#allocation11], %s366
        %p368 = pneg %p216
        %p369 = pneg %p213
        %s370 = sand.u32 %s203, 1
        %s371 = scalar_lea.sflag [#allocation13], %s370
        %s372 = sand.u32 %s203, 1
        %s373 = smul.addr %s372, 64
        %s374 = scalar_lea.vmem [#allocation12], %s373
        %v376 = vld [vmem:[%s2] sm:$0xf]
        %v377 = vld [vmem:[%s3] sm:$0xf]
        %v378 = vld [vmem:[%s3 + $0x4] sm:$0xf]
        %v379 = vld [vmem:[%s316] sm:$0xff]
        %v380 = vld [vmem:[%s316 + $0x8] sm:$0xff]
        %v381 = vld [vmem:[%s316 + $0x10] sm:$0xff]
        %v382 = vld [vmem:[%s316 + $0x18] sm:$0xff]
        %v383 = vld [vmem:[%s316 + $0x20] sm:$0xff]
        %v384 = vld [vmem:[%s316 + $0x28] sm:$0xff]
        %v385 = vld [vmem:[%s316 + $0x30] sm:$0xff]
        %v386 = vld [vmem:[%s316 + $0x38] sm:$0xff]
        %v387 = vpack.c.bf16 %v380, %v379
        %v388 = vpack.c.bf16 %v382, %v381
        %v389 = vpack.c.bf16 %v384, %v383
        %v390 = vpack.c.bf16 %v386, %v385
        %v391 = vld [vmem:[%s325] sm:$0xff]
        %v392 = vld [vmem:[%s325 + $0x8] sm:$0xff]
        %v393 = vld [vmem:[%s325 + $0x10] sm:$0xff]
        %v394 = vld [vmem:[%s325 + $0x18] sm:$0xff]
        %v395 = vld [vmem:[%s325 + $0x20] sm:$0xff]
        %v396 = vld [vmem:[%s325 + $0x28] sm:$0xff]
        %v397 = vld [vmem:[%s325 + $0x30] sm:$0xff]
        %v398 = vld [vmem:[%s325 + $0x38] sm:$0xff]
        %v399 = vpack.c.bf16 %v392, %v391
        %v400 = vpack.c.bf16 %v394, %v393
        %v401 = vpack.c.bf16 %v396, %v395
        %v402 = vpack.c.bf16 %v398, %v397
        %v405 = vunpack.c.l.b16 %v377
        %v406 = vunpack.c.l.b16 %v378
        %v407 = vpack.c.b16 %v406, %v405
        %vm409 = vcmask 130048
        %v411 = vsel %vm409, %v387, 0
        %v414 = vsel %vm409, %v388, 0
        %v417 = vsel %vm409, %v389, 0
        %v420 = vsel %vm409, %v390, 0
        %v423 = vsel %vm409, %v399, 0
        %v426 = vsel %vm409, %v400, 0
        %v429 = vsel %vm409, %v401, 0
        %v432 = vsel %vm409, %v402, 0
        %434 = vmatprep.subr.bf16.mxu0 0
        %435 = vmatpush1.bf16.msra.mxu0 0
        %436 = vmatprep.subr.bf16.mxu0 0
        %437 = vmatpush1.bf16.msra.mxu0 0
        %438 = vmatprep.subr.bf16.mxu0 0
        %439 = vmatpush1.bf16.msra.mxu0 0
        %440 = vmatprep.subr.bf16.mxu0 0
        %441 = vmatpush1.bf16.msra.mxu0 0
        %442 = vmatprep.subr.bf16.mxu0 0
        %443 = vmatpush1.bf16.msra.mxu0 0
        %444 = vmatprep.subr.bf16.mxu0 0
        %445 = vmatpush1.bf16.msra.mxu0 0
        %446 = vmatprep.subr.bf16.mxu0 0
        %447 = vmatpush1.bf16.msra.mxu0 0
        %448 = vmatprep.subr.bf16.mxu0 0
        %449 = vmatpush1.bf16.msra.mxu0 %v407
        %450 = vmatprep.subr.bf16.mxu0 0
        %451 = vmatpush2.bf16.msra.mxu0 0
        %452 = vmatprep.subr.bf16.mxu0 0
        %453 = vmatpush2.bf16.msra.mxu0 0
        %454 = vmatprep.subr.bf16.mxu0 0
        %455 = vmatpush2.bf16.msra.mxu0 0
        %456 = vmatprep.subr.bf16.mxu0 0
        %457 = vmatpush2.bf16.msra.mxu0 0
        %458 = vmatprep.subr.bf16.mxu0 0
        %459 = vmatpush2.bf16.msra.mxu0 0
        %460 = vmatprep.subr.bf16.mxu0 0
        %461 = vmatpush2.bf16.msra.mxu0 0
        %462 = vmatprep.subr.bf16.mxu0 0
        %463 = vmatpush2.bf16.msra.mxu0 0
        %464 = vmatprep.subr.bf16.mxu0 0
        %465 = vmatpush2.bf16.msra.mxu0 0
        %466 = vmatprep.mubr.bf16.mxu0 0
        %467 = vmatmul.mubr.bf16.gmra.mxu0 %v411
        %v468 = vpop.f32.mrf.mxu0
        %v469 = vadd.f32 0.0, %v468
        %v470 = vpop.f32.mrf.mxu0
        %v471 = vpop.f32.mrf.mxu0
        %v472 = vadd.f32 0.0, %v471
        %v473 = vpop.f32.mrf.mxu0
        %474 = vmatprep.mubr.bf16.mxu0 0
        %475 = vmatmul.mubr.bf16.gmra.mxu0 %v414
        %v476 = vpop.f32.mrf.mxu0
        %v477 = vadd.f32 0.0, %v476
        %v478 = vpop.f32.mrf.mxu0
        %v479 = vpop.f32.mrf.mxu0
        %v480 = vadd.f32 0.0, %v479
        %v481 = vpop.f32.mrf.mxu0
        %482 = vmatprep.mubr.bf16.mxu0 0
        %483 = vmatmul.mubr.bf16.gmra.mxu0 %v417
        %v484 = vpop.f32.mrf.mxu0
        %v485 = vadd.f32 0.0, %v484
        %v486 = vpop.f32.mrf.mxu0
        %v487 = vpop.f32.mrf.mxu0
        %v488 = vadd.f32 0.0, %v487
        %v489 = vpop.f32.mrf.mxu0
        %490 = vmatprep.mubr.bf16.mxu0 0
        %491 = vmatmul.mubr.bf16.gmra.mxu0 %v420
        %v492 = vpop.f32.mrf.mxu0
        %v493 = vadd.f32 0.0, %v492
        %v494 = vpop.f32.mrf.mxu0
        %v495 = vpop.f32.mrf.mxu0
        %v496 = vadd.f32 0.0, %v495
        %v497 = vpop.f32.mrf.mxu0
        %498 = vmatprep.mubr.bf16.mxu0 0
        %499 = vmatmul.mubr.bf16.gmra.mxu0 %v423
        %v500 = vpop.f32.mrf.mxu0
        %v501 = vadd.f32 0.0, %v500
        %v502 = vpop.f32.mrf.mxu0
        %v503 = vpop.f32.mrf.mxu0
        %v504 = vadd.f32 0.0, %v503
        %v505 = vpop.f32.mrf.mxu0
        %506 = vmatprep.mubr.bf16.mxu0 0
        %507 = vmatmul.mubr.bf16.gmra.mxu0 %v426
        %v508 = vpop.f32.mrf.mxu0
        %v509 = vadd.f32 0.0, %v508
        %v510 = vpop.f32.mrf.mxu0
        %v511 = vpop.f32.mrf.mxu0
        %v512 = vadd.f32 0.0, %v511
        %v513 = vpop.f32.mrf.mxu0
        %514 = vmatprep.mubr.bf16.mxu0 0
        %515 = vmatmul.mubr.bf16.gmra.mxu0 %v429
        %v516 = vpop.f32.mrf.mxu0
        %v517 = vadd.f32 0.0, %v516
        %v518 = vpop.f32.mrf.mxu0
        %v519 = vpop.f32.mrf.mxu0
        %v520 = vadd.f32 0.0, %v519
        %v521 = vpop.f32.mrf.mxu0
        %522 = vmatprep.mubr.bf16.mxu0 0
        %523 = vmatmul.mubr.bf16.gmra.mxu0 %v432
        %v524 = vpop.f32.mrf.mxu0
        %v525 = vadd.f32 0.0, %v524
        %v526 = vpop.f32.mrf.mxu0
        %v527 = vpop.f32.mrf.mxu0
        %v528 = vadd.f32 0.0, %v527
        %v529 = vpop.f32.mrf.mxu0
        %530 = vdwg.mxu0
        %v531 = vpack.c.bf16 %v472, %v469
        %v533 = vsel %vm409, %v376, 0
        %535 = vmatprep.subr.bf16.mxu0 0
        %536 = vmatpush1.bf16.msra.mxu0 0
        %537 = vmatprep.subr.bf16.mxu0 0
        %538 = vmatpush1.bf16.msra.mxu0 0
        %539 = vmatprep.subr.bf16.mxu0 0
        %540 = vmatpush1.bf16.msra.mxu0 0
        %541 = vmatprep.subr.bf16.mxu0 0
        %542 = vmatpush1.bf16.msra.mxu0 0
        %543 = vmatprep.subr.bf16.mxu0 0
        %544 = vmatpush1.bf16.msra.mxu0 0
        %545 = vmatprep.subr.bf16.mxu0 0
        %546 = vmatpush1.bf16.msra.mxu0 0
        %547 = vmatprep.subr.bf16.mxu0 0
        %548 = vmatpush1.bf16.msra.mxu0 0
        %549 = vmatprep.subr.bf16.mxu0 0
        %550 = vmatpush1.bf16.msra.mxu0 %v531
        %551 = vmatprep.subr.bf16.mxu0 0
        %552 = vmatpush2.bf16.msra.mxu0 0
        %553 = vmatprep.subr.bf16.mxu0 0
        %554 = vmatpush2.bf16.msra.mxu0 0
        %555 = vmatprep.subr.bf16.mxu0 0
        %556 = vmatpush2.bf16.msra.mxu0 0
        %557 = vmatprep.subr.bf16.mxu0 0
        %558 = vmatpush2.bf16.msra.mxu0 0
        %559 = vmatprep.subr.bf16.mxu0 0
        %560 = vmatpush2.bf16.msra.mxu0 0
        %561 = vmatprep.subr.bf16.mxu0 0
        %562 = vmatpush2.bf16.msra.mxu0 0
        %563 = vmatprep.subr.bf16.mxu0 0
        %564 = vmatpush2.bf16.msra.mxu0 0
        %565 = vmatprep.subr.bf16.mxu0 0
        %566 = vmatpush2.bf16.msra.mxu0 0
        %567 = vmatprep.mubr.bf16.mxu0 0
        %568 = vmatmul.mubr.bf16.gmra.mxu0 %v533
        %v569 = vpop.f32.mrf.mxu0
        %v570 = vadd.f32 0.0, %v569
        %v571 = vpop.f32.mrf.mxu0
        %v572 = vpop.f32.mrf.mxu0
        %v573 = vpop.f32.mrf.mxu0
        %574 = vdwg.mxu0
        %v575 = vpack.c.bf16 %v480, %v477
        %576 = vmatprep.subr.bf16.mxu0 0
        %577 = vmatpush1.bf16.msra.mxu0 0
        %578 = vmatprep.subr.bf16.mxu0 0
        %579 = vmatpush1.bf16.msra.mxu0 0
        %580 = vmatprep.subr.bf16.mxu0 0
        %581 = vmatpush1.bf16.msra.mxu0 0
        %582 = vmatprep.subr.bf16.mxu0 0
        %583 = vmatpush1.bf16.msra.mxu0 0
        %584 = vmatprep.subr.bf16.mxu0 0
        %585 = vmatpush1.bf16.msra.mxu0 0
        %586 = vmatprep.subr.bf16.mxu0 0
        %587 = vmatpush1.bf16.msra.mxu0 0
        %588 = vmatprep.subr.bf16.mxu0 0
        %589 = vmatpush1.bf16.msra.mxu0 0
        %590 = vmatprep.subr.bf16.mxu0 0
        %591 = vmatpush1.bf16.msra.mxu0 %v575
        %592 = vmatprep.subr.bf16.mxu0 0
        %593 = vmatpush2.bf16.msra.mxu0 0
        %594 = vmatprep.subr.bf16.mxu0 0
        %595 = vmatpush2.bf16.msra.mxu0 0
        %596 = vmatprep.subr.bf16.mxu0 0
        %597 = vmatpush2.bf16.msra.mxu0 0
        %598 = vmatprep.subr.bf16.mxu0 0
        %599 = vmatpush2.bf16.msra.mxu0 0
        %600 = vmatprep.subr.bf16.mxu0 0
        %601 = vmatpush2.bf16.msra.mxu0 0
        %602 = vmatprep.subr.bf16.mxu0 0
        %603 = vmatpush2.bf16.msra.mxu0 0
        %604 = vmatprep.subr.bf16.mxu0 0
        %605 = vmatpush2.bf16.msra.mxu0 0
        %606 = vmatprep.subr.bf16.mxu0 0
        %607 = vmatpush2.bf16.msra.mxu0 0
        %608 = vmatprep.mubr.bf16.mxu0 0
        %609 = vmatmul.mubr.bf16.gmra.mxu0 %v533
        %v610 = vpop.f32.mrf.mxu0
        %v611 = vadd.f32 0.0, %v610
        %v612 = vpop.f32.mrf.mxu0
        %v613 = vpop.f32.mrf.mxu0
        %v614 = vpop.f32.mrf.mxu0
        %615 = vdwg.mxu0
        %v616 = vpack.c.bf16 %v488, %v485
        %617 = vmatprep.subr.bf16.mxu0 0
        %618 = vmatpush1.bf16.msra.mxu0 0
        %619 = vmatprep.subr.bf16.mxu0 0
        %620 = vmatpush1.bf16.msra.mxu0 0
        %621 = vmatprep.subr.bf16.mxu0 0
        %622 = vmatpush1.bf16.msra.mxu0 0
        %623 = vmatprep.subr.bf16.mxu0 0
        %624 = vmatpush1.bf16.msra.mxu0 0
        %625 = vmatprep.subr.bf16.mxu0 0
        %626 = vmatpush1.bf16.msra.mxu0 0
        %627 = vmatprep.subr.bf16.mxu0 0
        %628 = vmatpush1.bf16.msra.mxu0 0
        %629 = vmatprep.subr.bf16.mxu0 0
        %630 = vmatpush1.bf16.msra.mxu0 0
        %631 = vmatprep.subr.bf16.mxu0 0
        %632 = vmatpush1.bf16.msra.mxu0 %v616
        %633 = vmatprep.subr.bf16.mxu0 0
        %634 = vmatpush2.bf16.msra.mxu0 0
        %635 = vmatprep.subr.bf16.mxu0 0
        %636 = vmatpush2.bf16.msra.mxu0 0
        %637 = vmatprep.subr.bf16.mxu0 0
        %638 = vmatpush2.bf16.msra.mxu0 0
        %639 = vmatprep.subr.bf16.mxu0 0
        %640 = vmatpush2.bf16.msra.mxu0 0
        %641 = vmatprep.subr.bf16.mxu0 0
        %642 = vmatpush2.bf16.msra.mxu0 0
        %643 = vmatprep.subr.bf16.mxu0 0
        %644 = vmatpush2.bf16.msra.mxu0 0
        %645 = vmatprep.subr.bf16.mxu0 0
        %646 = vmatpush2.bf16.msra.mxu0 0
        %647 = vmatprep.subr.bf16.mxu0 0
        %648 = vmatpush2.bf16.msra.mxu0 0
        %649 = vmatprep.mubr.bf16.mxu0 0
        %650 = vmatmul.mubr.bf16.gmra.mxu0 %v533
        %v651 = vpop.f32.mrf.mxu0
        %v652 = vadd.f32 0.0, %v651
        %v653 = vpop.f32.mrf.mxu0
        %v654 = vpop.f32.mrf.mxu0
        %v655 = vpop.f32.mrf.mxu0
        %656 = vdwg.mxu0
        %v657 = vpack.c.bf16 %v496, %v493
        %658 = vmatprep.subr.bf16.mxu0 0
        %659 = vmatpush1.bf16.msra.mxu0 0
        %660 = vmatprep.subr.bf16.mxu0 0
        %661 = vmatpush1.bf16.msra.mxu0 0
        %662 = vmatprep.subr.bf16.mxu0 0
        %663 = vmatpush1.bf16.msra.mxu0 0
        %664 = vmatprep.subr.bf16.mxu0 0
        %665 = vmatpush1.bf16.msra.mxu0 0
        %666 = vmatprep.subr.bf16.mxu0 0
        %667 = vmatpush1.bf16.msra.mxu0 0
        %668 = vmatprep.subr.bf16.mxu0 0
        %669 = vmatpush1.bf16.msra.mxu0 0
        %670 = vmatprep.subr.bf16.mxu0 0
        %671 = vmatpush1.bf16.msra.mxu0 0
        %672 = vmatprep.subr.bf16.mxu0 0
        %673 = vmatpush1.bf16.msra.mxu0 %v657
        %674 = vmatprep.subr.bf16.mxu0 0
        %675 = vmatpush2.bf16.msra.mxu0 0
        %676 = vmatprep.subr.bf16.mxu0 0
        %677 = vmatpush2.bf16.msra.mxu0 0
        %678 = vmatprep.subr.bf16.mxu0 0
        %679 = vmatpush2.bf16.msra.mxu0 0
        %680 = vmatprep.subr.bf16.mxu0 0
        %681 = vmatpush2.bf16.msra.mxu0 0
        %682 = vmatprep.subr.bf16.mxu0 0
        %683 = vmatpush2.bf16.msra.mxu0 0
        %684 = vmatprep.subr.bf16.mxu0 0
        %685 = vmatpush2.bf16.msra.mxu0 0
        %686 = vmatprep.subr.bf16.mxu0 0
        %687 = vmatpush2.bf16.msra.mxu0 0
        %688 = vmatprep.subr.bf16.mxu0 0
        %689 = vmatpush2.bf16.msra.mxu0 0
        %690 = vmatprep.mubr.bf16.mxu0 0
        %691 = vmatmul.mubr.bf16.gmra.mxu0 %v533
        %v692 = vpop.f32.mrf.mxu0
        %v693 = vadd.f32 0.0, %v692
        %v694 = vpop.f32.mrf.mxu0
        %v695 = vpop.f32.mrf.mxu0
        %v696 = vpop.f32.mrf.mxu0
        %697 = vdwg.mxu0
        %s698 = sld [smem:[#allocation8]]
        %v699 = vstv %s698
        %v700 = vmul.f32 %v699, %v570
        %s701 = sld [smem:[#allocation8 + $0x1]]
        %v702 = vstv %s701
        %v703 = vmul.f32 %v702, %v611
        %v704 = vadd.f32 %v700, %v703
        %s705 = sld [smem:[#allocation8 + $0x2]]
        %v706 = vstv %s705
        %v707 = vmul.f32 %v706, %v652
        %v708 = vadd.f32 %v704, %v707
        %s709 = sld [smem:[#allocation8 + $0x3]]
        %v710 = vstv %s709
        %v711 = vmul.f32 %v710, %v693
        %v712 = vadd.f32 %v708, %v711
        %vm713 = vcmask 64512
        %714 = vst.msk [vmem:[%s367] sm:$0xff] %vm713, %v712
        %s715 = sld [smem:[#allocation8 + $0x80]]
        %v716 = vstv %s715
        %v717 = vmul.f32 %v716, %v570
        %s718 = sld [smem:[#allocation8 + $0x81]]
        %v719 = vstv %s718
        %v720 = vmul.f32 %v719, %v611
        %v721 = vadd.f32 %v717, %v720
        %s722 = sld [smem:[#allocation8 + $0x82]]
        %v723 = vstv %s722
        %v724 = vmul.f32 %v723, %v652
        %v725 = vadd.f32 %v721, %v724
        %s726 = sld [smem:[#allocation8 + $0x83]]
        %v727 = vstv %s726
        %v728 = vmul.f32 %v727, %v693
        %v729 = vadd.f32 %v725, %v728
        %s730 = scalar_lea.vmem %s367, 8 [#allocation11]
        %731 = vst.msk [vmem:[%s730] sm:$0xff] %vm713, %v729
        %s732 = sld [smem:[#allocation8 + $0x100]]
        %v733 = vstv %s732
        %v734 = vmul.f32 %v733, %v570
        %s735 = sld [smem:[#allocation8 + $0x101]]
        %v736 = vstv %s735
        %v737 = vmul.f32 %v736, %v611
        %v738 = vadd.f32 %v734, %v737
        %s739 = sld [smem:[#allocation8 + $0x102]]
        %v740 = vstv %s739
        %v741 = vmul.f32 %v740, %v652
        %v742 = vadd.f32 %v738, %v741
        %s743 = sld [smem:[#allocation8 + $0x103]]
        %v744 = vstv %s743
        %v745 = vmul.f32 %v744, %v693
        %v746 = vadd.f32 %v742, %v745
        %s747 = scalar_lea.vmem %s367, 16 [#allocation11]
        %748 = vst.msk [vmem:[%s747] sm:$0xff] %vm713, %v746
        %s749 = sld [smem:[#allocation8 + $0x180]]
        %v750 = vstv %s749
        %v751 = vmul.f32 %v750, %v570
        %s752 = sld [smem:[#allocation8 + $0x181]]
        %v753 = vstv %s752
        %v754 = vmul.f32 %v753, %v611
        %v755 = vadd.f32 %v751, %v754
        %s756 = sld [smem:[#allocation8 + $0x182]]
        %v757 = vstv %s756
        %v758 = vmul.f32 %v757, %v652
        %v759 = vadd.f32 %v755, %v758
        %s760 = sld [smem:[#allocation8 + $0x183]]
        %v761 = vstv %s760
        %v762 = vmul.f32 %v761, %v693
        %v763 = vadd.f32 %v759, %v762
        %s764 = scalar_lea.vmem %s367, 24 [#allocation11]
        %765 = vst.msk [vmem:[%s764] sm:$0xff] %vm713, %v763
        %s766 = sld [smem:[#allocation8 + $0x200]]
        %v767 = vstv %s766
        %v768 = vmul.f32 %v767, %v570
        %s769 = sld [smem:[#allocation8 + $0x201]]
        %v770 = vstv %s769
        %v771 = vmul.f32 %v770, %v611
        %v772 = vadd.f32 %v768, %v771
        %s773 = sld [smem:[#allocation8 + $0x202]]
        %v774 = vstv %s773
        %v775 = vmul.f32 %v774, %v652
        %v776 = vadd.f32 %v772, %v775
        %s777 = sld [smem:[#allocation8 + $0x203]]
        %v778 = vstv %s777
        %v779 = vmul.f32 %v778, %v693
        %v780 = vadd.f32 %v776, %v779
        %s781 = scalar_lea.vmem %s367, 32 [#allocation11]
        %782 = vst.msk [vmem:[%s781] sm:$0xff] %vm713, %v780
        %s783 = sld [smem:[#allocation8 + $0x280]]
        %v784 = vstv %s783
        %v785 = vmul.f32 %v784, %v570
        %s786 = sld [smem:[#allocation8 + $0x281]]
        %v787 = vstv %s786
        %v788 = vmul.f32 %v787, %v611
        %v789 = vadd.f32 %v785, %v788
        %s790 = sld [smem:[#allocation8 + $0x282]]
        %v791 = vstv %s790
        %v792 = vmul.f32 %v791, %v652
        %v793 = vadd.f32 %v789, %v792
        %s794 = sld [smem:[#allocation8 + $0x283]]
        %v795 = vstv %s794
        %v796 = vmul.f32 %v795, %v693
        %v797 = vadd.f32 %v793, %v796
        %s798 = scalar_lea.vmem %s367, 40 [#allocation11]
        %799 = vst.msk [vmem:[%s798] sm:$0xff] %vm713, %v797
        %s800 = sld [smem:[#allocation8 + $0x300]]
        %v801 = vstv %s800
        %v802 = vmul.f32 %v801, %v570
        %s803 = sld [smem:[#allocation8 + $0x301]]
        %v804 = vstv %s803
        %v805 = vmul.f32 %v804, %v611
        %v806 = vadd.f32 %v802, %v805
        %s807 = sld [smem:[#allocation8 + $0x302]]
        %v808 = vstv %s807
        %v809 = vmul.f32 %v808, %v652
        %v810 = vadd.f32 %v806, %v809
        %s811 = sld [smem:[#allocation8 + $0x303]]
        %v812 = vstv %s811
        %v813 = vmul.f32 %v812, %v693
        %v814 = vadd.f32 %v810, %v813
        %s815 = scalar_lea.vmem %s367, 48 [#allocation11]
        %816 = vst.msk [vmem:[%s815] sm:$0xff] %vm713, %v814
        %s817 = sld [smem:[#allocation8 + $0x380]]
        %v818 = vstv %s817
        %v819 = vmul.f32 %v818, %v570
        %s820 = sld [smem:[#allocation8 + $0x381]]
        %v821 = vstv %s820
        %v822 = vmul.f32 %v821, %v611
        %v823 = vadd.f32 %v819, %v822
        %s824 = sld [smem:[#allocation8 + $0x382]]
        %v825 = vstv %s824
        %v826 = vmul.f32 %v825, %v652
        %v827 = vadd.f32 %v823, %v826
        %s828 = sld [smem:[#allocation8 + $0x383]]
        %v829 = vstv %s828
        %v830 = vmul.f32 %v829, %v693
        %v831 = vadd.f32 %v827, %v830
        %s832 = scalar_lea.vmem %s367, 56 [#allocation11]
        %833 = vst.msk [vmem:[%s832] sm:$0xff] %vm713, %v831
        %v834 = vpack.c.bf16 %v504, %v501
        %835 = vmatprep.subr.bf16.mxu0 0
        %836 = vmatpush1.bf16.msra.mxu0 0
        %837 = vmatprep.subr.bf16.mxu0 0
        %838 = vmatpush1.bf16.msra.mxu0 0
        %839 = vmatprep.subr.bf16.mxu0 0
        %840 = vmatpush1.bf16.msra.mxu0 0
        %841 = vmatprep.subr.bf16.mxu0 0
        %842 = vmatpush1.bf16.msra.mxu0 0
        %843 = vmatprep.subr.bf16.mxu0 0
        %844 = vmatpush1.bf16.msra.mxu0 0
        %845 = vmatprep.subr.bf16.mxu0 0
        %846 = vmatpush1.bf16.msra.mxu0 0
        %847 = vmatprep.subr.bf16.mxu0 0
        %848 = vmatpush1.bf16.msra.mxu0 0
        %849 = vmatprep.subr.bf16.mxu0 0
        %850 = vmatpush1.bf16.msra.mxu0 %v834
        %851 = vmatprep.subr.bf16.mxu0 0
        %852 = vmatpush2.bf16.msra.mxu0 0
        %853 = vmatprep.subr.bf16.mxu0 0
        %854 = vmatpush2.bf16.msra.mxu0 0
        %855 = vmatprep.subr.bf16.mxu0 0
        %856 = vmatpush2.bf16.msra.mxu0 0
        %857 = vmatprep.subr.bf16.mxu0 0
        %858 = vmatpush2.bf16.msra.mxu0 0
        %859 = vmatprep.subr.bf16.mxu0 0
        %860 = vmatpush2.bf16.msra.mxu0 0
        %861 = vmatprep.subr.bf16.mxu0 0
        %862 = vmatpush2.bf16.msra.mxu0 0
        %863 = vmatprep.subr.bf16.mxu0 0
        %864 = vmatpush2.bf16.msra.mxu0 0
        %865 = vmatprep.subr.bf16.mxu0 0
        %866 = vmatpush2.bf16.msra.mxu0 0
        %867 = vmatprep.mubr.bf16.mxu0 0
        %868 = vmatmul.mubr.bf16.gmra.mxu0 %v533
        %v869 = vpop.f32.mrf.mxu0
        %v870 = vadd.f32 0.0, %v869
        %v871 = vpop.f32.mrf.mxu0
        %v872 = vpop.f32.mrf.mxu0
        %v873 = vpop.f32.mrf.mxu0
        %874 = vdwg.mxu0
        %v875 = vpack.c.bf16 %v512, %v509
        %876 = vmatprep.subr.bf16.mxu0 0
        %877 = vmatpush1.bf16.msra.mxu0 0
        %878 = vmatprep.subr.bf16.mxu0 0
        %879 = vmatpush1.bf16.msra.mxu0 0
        %880 = vmatprep.subr.bf16.mxu0 0
        %881 = vmatpush1.bf16.msra.mxu0 0
        %882 = vmatprep.subr.bf16.mxu0 0
        %883 = vmatpush1.bf16.msra.mxu0 0
        %884 = vmatprep.subr.bf16.mxu0 0
        %885 = vmatpush1.bf16.msra.mxu0 0
        %886 = vmatprep.subr.bf16.mxu0 0
        %887 = vmatpush1.bf16.msra.mxu0 0
        %888 = vmatprep.subr.bf16.mxu0 0
        %889 = vmatpush1.bf16.msra.mxu0 0
        %890 = vmatprep.subr.bf16.mxu0 0
        %891 = vmatpush1.bf16.msra.mxu0 %v875
        %892 = vmatprep.subr.bf16.mxu0 0
        %893 = vmatpush2.bf16.msra.mxu0 0
        %894 = vmatprep.subr.bf16.mxu0 0
        %895 = vmatpush2.bf16.msra.mxu0 0
        %896 = vmatprep.subr.bf16.mxu0 0
        %897 = vmatpush2.bf16.msra.mxu0 0
        %898 = vmatprep.subr.bf16.mxu0 0
        %899 = vmatpush2.bf16.msra.mxu0 0
        %900 = vmatprep.subr.bf16.mxu0 0
        %901 = vmatpush2.bf16.msra.mxu0 0
        %902 = vmatprep.subr.bf16.mxu0 0
        %903 = vmatpush2.bf16.msra.mxu0 0
        %904 = vmatprep.subr.bf16.mxu0 0
        %905 = vmatpush2.bf16.msra.mxu0 0
        %906 = vmatprep.subr.bf16.mxu0 0
        %907 = vmatpush2.bf16.msra.mxu0 0
        %908 = vmatprep.mubr.bf16.mxu0 0
        %909 = vmatmul.mubr.bf16.gmra.mxu0 %v533
        %v910 = vpop.f32.mrf.mxu0
        %v911 = vadd.f32 0.0, %v910
        %v912 = vpop.f32.mrf.mxu0
        %v913 = vpop.f32.mrf.mxu0
        %v914 = vpop.f32.mrf.mxu0
        %915 = vdwg.mxu0
        %v916 = vpack.c.bf16 %v520, %v517
        %917 = vmatprep.subr.bf16.mxu0 0
        %918 = vmatpush1.bf16.msra.mxu0 0
        %919 = vmatprep.subr.bf16.mxu0 0
        %920 = vmatpush1.bf16.msra.mxu0 0
        %921 = vmatprep.subr.bf16.mxu0 0
        %922 = vmatpush1.bf16.msra.mxu0 0
        %923 = vmatprep.subr.bf16.mxu0 0
        %924 = vmatpush1.bf16.msra.mxu0 0
        %925 = vmatprep.subr.bf16.mxu0 0
        %926 = vmatpush1.bf16.msra.mxu0 0
        %927 = vmatprep.subr.bf16.mxu0 0
        %928 = vmatpush1.bf16.msra.mxu0 0
        %929 = vmatprep.subr.bf16.mxu0 0
        %930 = vmatpush1.bf16.msra.mxu0 0
        %931 = vmatprep.subr.bf16.mxu0 0
        %932 = vmatpush1.bf16.msra.mxu0 %v916
        %933 = vmatprep.subr.bf16.mxu0 0
        %934 = vmatpush2.bf16.msra.mxu0 0
        %935 = vmatprep.subr.bf16.mxu0 0
        %936 = vmatpush2.bf16.msra.mxu0 0
        %937 = vmatprep.subr.bf16.mxu0 0
        %938 = vmatpush2.bf16.msra.mxu0 0
        %939 = vmatprep.subr.bf16.mxu0 0
        %940 = vmatpush2.bf16.msra.mxu0 0
        %941 = vmatprep.subr.bf16.mxu0 0
        %942 = vmatpush2.bf16.msra.mxu0 0
        %943 = vmatprep.subr.bf16.mxu0 0
        %944 = vmatpush2.bf16.msra.mxu0 0
        %945 = vmatprep.subr.bf16.mxu0 0
        %946 = vmatpush2.bf16.msra.mxu0 0
        %947 = vmatprep.subr.bf16.mxu0 0
        %948 = vmatpush2.bf16.msra.mxu0 0
        %949 = vmatprep.mubr.bf16.mxu0 0
        %950 = vmatmul.mubr.bf16.gmra.mxu0 %v533
        %v951 = vpop.f32.mrf.mxu0
        %v952 = vadd.f32 0.0, %v951
        %v953 = vpop.f32.mrf.mxu0
        %v954 = vpop.f32.mrf.mxu0
        %v955 = vpop.f32.mrf.mxu0
        %956 = vdwg.mxu0
        %v957 = vpack.c.bf16 %v528, %v525
        %958 = vmatprep.subr.bf16.mxu0 0
        %959 = vmatpush1.bf16.msra.mxu0 0
        %960 = vmatprep.subr.bf16.mxu0 0
        %961 = vmatpush1.bf16.msra.mxu0 0
        %962 = vmatprep.subr.bf16.mxu0 0
        %963 = vmatpush1.bf16.msra.mxu0 0
        %964 = vmatprep.subr.bf16.mxu0 0
        %965 = vmatpush1.bf16.msra.mxu0 0
        %966 = vmatprep.subr.bf16.mxu0 0
        %967 = vmatpush1.bf16.msra.mxu0 0
        %968 = vmatprep.subr.bf16.mxu0 0
        %969 = vmatpush1.bf16.msra.mxu0 0
        %970 = vmatprep.subr.bf16.mxu0 0
        %971 = vmatpush1.bf16.msra.mxu0 0
        %972 = vmatprep.subr.bf16.mxu0 0
        %973 = vmatpush1.bf16.msra.mxu0 %v957
        %974 = vmatprep.subr.bf16.mxu0 0
        %975 = vmatpush2.bf16.msra.mxu0 0
        %976 = vmatprep.subr.bf16.mxu0 0
        %977 = vmatpush2.bf16.msra.mxu0 0
        %978 = vmatprep.subr.bf16.mxu0 0
        %979 = vmatpush2.bf16.msra.mxu0 0
        %980 = vmatprep.subr.bf16.mxu0 0
        %981 = vmatpush2.bf16.msra.mxu0 0
        %982 = vmatprep.subr.bf16.mxu0 0
        %983 = vmatpush2.bf16.msra.mxu0 0
        %984 = vmatprep.subr.bf16.mxu0 0
        %985 = vmatpush2.bf16.msra.mxu0 0
        %986 = vmatprep.subr.bf16.mxu0 0
        %987 = vmatpush2.bf16.msra.mxu0 0
        %988 = vmatprep.subr.bf16.mxu0 0
        %989 = vmatpush2.bf16.msra.mxu0 0
        %990 = vmatprep.mubr.bf16.mxu0 0
        %991 = vmatmul.mubr.bf16.gmra.mxu0 %v533
        %v992 = vpop.f32.mrf.mxu0
        %v993 = vadd.f32 0.0, %v992
        %v994 = vpop.f32.mrf.mxu0
        %v995 = vpop.f32.mrf.mxu0
        %v996 = vpop.f32.mrf.mxu0
        %997 = vdwg.mxu0
        %s998 = sld [smem:[#allocation9]]
        %v999 = vstv %s998
        %v1000 = vmul.f32 %v999, %v870
        %s1001 = sld [smem:[#allocation9 + $0x1]]
        %v1002 = vstv %s1001
        %v1003 = vmul.f32 %v1002, %v911
        %v1004 = vadd.f32 %v1000, %v1003
        %s1005 = sld [smem:[#allocation9 + $0x2]]
        %v1006 = vstv %s1005
        %v1007 = vmul.f32 %v1006, %v952
        %v1008 = vadd.f32 %v1004, %v1007
        %s1009 = sld [smem:[#allocation9 + $0x3]]
        %v1010 = vstv %s1009
        %v1011 = vmul.f32 %v1010, %v993
        %v1012 = vadd.f32 %v1008, %v1011
        %1013 = vst.msk [vmem:[%s374] sm:$0xff] %vm713, %v1012
        %s1014 = sld [smem:[#allocation9 + $0x80]]
        %v1015 = vstv %s1014
        %v1016 = vmul.f32 %v1015, %v870
        %s1017 = sld [smem:[#allocation9 + $0x81]]
        %v1018 = vstv %s1017
        %v1019 = vmul.f32 %v1018, %v911
        %v1020 = vadd.f32 %v1016, %v1019
        %s1021 = sld [smem:[#allocation9 + $0x82]]
        %v1022 = vstv %s1021
        %v1023 = vmul.f32 %v1022, %v952
        %v1024 = vadd.f32 %v1020, %v1023
        %s1025 = sld [smem:[#allocation9 + $0x83]]
        %v1026 = vstv %s1025
        %v1027 = vmul.f32 %v1026, %v993
        %v1028 = vadd.f32 %v1024, %v1027
        %s1029 = scalar_lea.vmem %s374, 8 [#allocation12]
        %1030 = vst.msk [vmem:[%s1029] sm:$0xff] %vm713, %v1028
        %s1031 = sld [smem:[#allocation9 + $0x100]]
        %v1032 = vstv %s1031
        %v1033 = vmul.f32 %v1032, %v870
        %s1034 = sld [smem:[#allocation9 + $0x101]]
        %v1035 = vstv %s1034
        %v1036 = vmul.f32 %v1035, %v911
        %v1037 = vadd.f32 %v1033, %v1036
        %s1038 = sld [smem:[#allocation9 + $0x102]]
        %v1039 = vstv %s1038
        %v1040 = vmul.f32 %v1039, %v952
        %v1041 = vadd.f32 %v1037, %v1040
        %s1042 = sld [smem:[#allocation9 + $0x103]]
        %v1043 = vstv %s1042
        %v1044 = vmul.f32 %v1043, %v993
        %v1045 = vadd.f32 %v1041, %v1044
        %s1046 = scalar_lea.vmem %s374, 16 [#allocation12]
        %1047 = vst.msk [vmem:[%s1046] sm:$0xff] %vm713, %v1045
        %s1048 = sld [smem:[#allocation9 + $0x180]]
        %v1049 = vstv %s1048
        %v1050 = vmul.f32 %v1049, %v870
        %s1051 = sld [smem:[#allocation9 + $0x181]]
        %v1052 = vstv %s1051
        %v1053 = vmul.f32 %v1052, %v911
        %v1054 = vadd.f32 %v1050, %v1053
        %s1055 = sld [smem:[#allocation9 + $0x182]]
        %v1056 = vstv %s1055
        %v1057 = vmul.f32 %v1056, %v952
        %v1058 = vadd.f32 %v1054, %v1057
        %s1059 = sld [smem:[#allocation9 + $0x183]]
        %v1060 = vstv %s1059
        %v1061 = vmul.f32 %v1060, %v993
        %v1062 = vadd.f32 %v1058, %v1061
        %s1063 = scalar_lea.vmem %s374, 24 [#allocation12]
        %1064 = vst.msk [vmem:[%s1063] sm:$0xff] %vm713, %v1062
        %s1065 = sld [smem:[#allocation9 + $0x200]]
        %v1066 = vstv %s1065
        %v1067 = vmul.f32 %v1066, %v870
        %s1068 = sld [smem:[#allocation9 + $0x201]]
        %v1069 = vstv %s1068
        %v1070 = vmul.f32 %v1069, %v911
        %v1071 = vadd.f32 %v1067, %v1070
        %s1072 = sld [smem:[#allocation9 + $0x202]]
        %v1073 = vstv %s1072
        %v1074 = vmul.f32 %v1073, %v952
        %v1075 = vadd.f32 %v1071, %v1074
        %s1076 = sld [smem:[#allocation9 + $0x203]]
        %v1077 = vstv %s1076
        %v1078 = vmul.f32 %v1077, %v993
        %v1079 = vadd.f32 %v1075, %v1078
        %s1080 = scalar_lea.vmem %s374, 32 [#allocation12]
        %1081 = vst.msk [vmem:[%s1080] sm:$0xff] %vm713, %v1079
        %s1082 = sld [smem:[#allocation9 + $0x280]]
        %v1083 = vstv %s1082
        %v1084 = vmul.f32 %v1083, %v870
        %s1085 = sld [smem:[#allocation9 + $0x281]]
        %v1086 = vstv %s1085
        %v1087 = vmul.f32 %v1086, %v911
        %v1088 = vadd.f32 %v1084, %v1087
        %s1089 = sld [smem:[#allocation9 + $0x282]]
        %v1090 = vstv %s1089
        %v1091 = vmul.f32 %v1090, %v952
        %v1092 = vadd.f32 %v1088, %v1091
        %s1093 = sld [smem:[#allocation9 + $0x283]]
        %v1094 = vstv %s1093
        %v1095 = vmul.f32 %v1094, %v993
        %v1096 = vadd.f32 %v1092, %v1095
        %s1097 = scalar_lea.vmem %s374, 40 [#allocation12]
        %1098 = vst.msk [vmem:[%s1097] sm:$0xff] %vm713, %v1096
        %s1099 = sld [smem:[#allocation9 + $0x300]]
        %v1100 = vstv %s1099
        %v1101 = vmul.f32 %v1100, %v870
        %s1102 = sld [smem:[#allocation9 + $0x301]]
        %v1103 = vstv %s1102
        %v1104 = vmul.f32 %v1103, %v911
        %v1105 = vadd.f32 %v1101, %v1104
        %s1106 = sld [smem:[#allocation9 + $0x302]]
        %v1107 = vstv %s1106
        %v1108 = vmul.f32 %v1107, %v952
        %v1109 = vadd.f32 %v1105, %v1108
        %s1110 = sld [smem:[#allocation9 + $0x303]]
        %v1111 = vstv %s1110
        %v1112 = vmul.f32 %v1111, %v993
        %v1113 = vadd.f32 %v1109, %v1112
        %s1114 = scalar_lea.vmem %s374, 48 [#allocation12]
        %1115 = vst.msk [vmem:[%s1114] sm:$0xff] %vm713, %v1113
        %s1116 = sld [smem:[#allocation9 + $0x380]]
        %v1117 = vstv %s1116
        %v1118 = vmul.f32 %v1117, %v870
        %s1119 = sld [smem:[#allocation9 + $0x381]]
        %v1120 = vstv %s1119
        %v1121 = vmul.f32 %v1120, %v911
        %v1122 = vadd.f32 %v1118, %v1121
        %s1123 = sld [smem:[#allocation9 + $0x382]]
        %v1124 = vstv %s1123
        %v1125 = vmul.f32 %v1124, %v952
        %v1126 = vadd.f32 %v1122, %v1125
        %s1127 = sld [smem:[#allocation9 + $0x383]]
        %v1128 = vstv %s1127
        %v1129 = vmul.f32 %v1128, %v993
        %v1130 = vadd.f32 %v1126, %v1129
        %s1131 = scalar_lea.vmem %s374, 56 [#allocation12]
        %1132 = vst.msk [vmem:[%s1131] sm:$0xff] %vm713, %v1130
        %s1133 = sand.u32 %s177, 1
        %s1134 = scalar_lea.sflag [#allocation4], %s1133
        %s1135 = sand.u32 %s177, 1
        %s1136 = smul.addr %s1135, 64
        %s1137 = scalar_lea.vmem [#allocation11], %s1136
        %s1138 = sand.u32 %s203, 1
        %s1139 = scalar_lea.sflag [#allocation13], %s1138
        %s1140 = sand.u32 %s203, 1
        %s1141 = smul.addr %s1140, 64
        %s1142 = scalar_lea.vmem [#allocation12], %s1141
        // Predicated region
        $region61: #{downsample_forward.1} parent=43 // pred_check
          %p1143 = pneg %p187
        $region62: #{downsample_forward.1} parent=43 // pred_check_branch
          %1145 = sbr.rel (%p1143) target = $region64
        $region63: #{downsample_forward.1} parent=43 // pred_region
          %s1147 = ssub.s32 1024, 1024
          %1148 = vsyncadd %s1134, %s1147
          %s1149 = smul.addr %s33, 8
          %s1150 = smul.addr %s1149, 128
          %s1151 = scalar_lea.hbm %s6, %s1150
          %s1152 = sshll.u32 %s1137, 4
          %s1153 = int_to_ptr.vmem [resolvable:$true] %s1152
          %1158 = dma.vmem_to_hbm [thread:$0]  %s1153, 1024, %s1151, %s1134, 128, 128, 8
        $region64: #{downsample_forward.1} parent=43 // pred_fallthru
          _
        // Predicated region
        $region65: #{downsample_forward.1} parent=43 // pred_check
          %p1159 = pneg %p213
        $region66: #{downsample_forward.1} parent=43 // pred_check_branch
          %1161 = sbr.rel (%p1159) target = $region68
        $region67: #{downsample_forward.1} parent=43 // pred_region
          %s1163 = ssub.s32 1024, 1024
          %1164 = vsyncadd %s1139, %s1163
          %s1165 = smul.addr %s33, 8
          %s1166 = smul.addr %s1165, 128
          %s1167 = scalar_lea.hbm %s7, %s1166
          %s1168 = sshll.u32 %s1142, 4
          %s1169 = int_to_ptr.vmem [resolvable:$true] %s1168
          %1174 = dma.vmem_to_hbm [thread:$0]  %s1169, 1024, %s1167, %s1139, 128, 128, 8
        $region68: #{downsample_forward.1} parent=43 // pred_fallthru
          _
      $region44: #{downsample_forward.1} parent=5 // pred_fallthru
        _
      %p1175 = scmp.le.s32.totalorder 2, %s28
      // Predicated region
      $region69: #{downsample_forward.1} parent=5 // pred_check
        %p1176 = pneg %p1175
      $region70: #{downsample_forward.1} parent=5 // pred_check_branch
        %1178 = sbr.rel (%p1176) target = $region72
      $region71: #{downsample_forward.1} parent=5 // pred_region
        %s1179 = ssub.s32 %s28, 2
        // Predicated region
        $region73: #{downsample_forward.1} parent=71 // pred_check
          %p1180 = pneg %p193
        $region74: #{downsample_forward.1} parent=71 // pred_check_branch
          %1182 = sbr.rel (%p1180) target = $region76
        $region75: #{downsample_forward.1} parent=71 // pred_region
          %s1183 = sand.u32 %s178, 1
          %s1184 = scalar_lea.sflag [#allocation4], %s1183
          %s1185 = sand.u32 %s178, 1
          %s1186 = smul.addr %s1185, 64
          %s1187 = scalar_lea.vmem [#allocation11], %s1186
          %1188 = dma.done %s1184, 1024
        $region76: #{downsample_forward.1} parent=71 // pred_fallthru
          _
        // Predicated region
        $region77: #{downsample_forward.1} parent=71 // pred_check
          %p1189 = pneg %p219
        $region78: #{downsample_forward.1} parent=71 // pred_check_branch
          %1191 = sbr.rel (%p1189) target = $region80
        $region79: #{downsample_forward.1} parent=71 // pred_region
          %s1192 = sand.u32 %s204, 1
          %s1193 = scalar_lea.sflag [#allocation13], %s1192
          %s1194 = sand.u32 %s204, 1
          %s1195 = smul.addr %s1194, 64
          %s1196 = scalar_lea.vmem [#allocation12], %s1195
          %1197 = dma.done %s1193, 1024
        $region80: #{downsample_forward.1} parent=71 // pred_fallthru
          _
      $region72: #{downsample_forward.1} parent=5 // pred_fallthru
        _
    $region6: #{downsample_forward.1} parent=1 // loop_footer
      %s32 = sadd.s32 1, %s28
    $region7: #{downsample_forward.1} parent=1 // loop_footer_branch
      %27 = sbr.rel target = $region3
    $region8: #{downsample_forward.1} parent=1 // loop_exit
      _
    %1198 = vsyncpa [#allocation3], 1
    %s1199 = scalar_lea.sflag [#allocation3], 1
    %1200 = vsyncpa %s1199, 1
    %1201 = vsyncpa [#allocation7], 1
    %s1202 = scalar_lea.sflag [#allocation7], 1
    %1203 = vsyncpa %s1202, 1
    %1204 = vsyncpa [#allocation4], 1
    %s1205 = scalar_lea.sflag [#allocation4], 1
    %1206 = vsyncpa %s1205, 1
    %1207 = vsyncpa [#allocation13], 1
    %s1208 = scalar_lea.sflag [#allocation13], 1
    %1209 = vsyncpa %s1208, 1
    %1210 = vsyncpa [#allocation5], 1
    %s1211 = scalar_lea.sflag [#allocation5], 1
    %1212 = vsyncpa %s1211, 1
    %1213 = vsyncpa [#allocation10], 1

</llo_original>
